<compile_context>
chip_gen: v5e
topology: v5e:2x2
jax: 0.10.0
libtpu: 0.0.40
codegen_flags: <defaults>
</compile_context>

<pallas_src>
import functools
import math

import jax
import jax.numpy as jnp
from jax.experimental import pallas as pl
from jax.experimental.pallas import tpu as pltpu

_LN_EPS = 1e-5


def _layer_norm(x, gamma, beta, eps=_LN_EPS):
    mean = jnp.mean(x, axis=-1, keepdims=True)
    var = jnp.mean((x - mean) ** 2, axis=-1, keepdims=True)
    return (x - mean) * jax.lax.rsqrt(var + eps) * gamma + beta


def _erf(x):
    # Abramowitz & Stegun 7.1.26 (|error| <= 1.5e-7): uses only exp/abs/VPU
    # arithmetic, avoiding any reliance on a lax.erf lowering inside Mosaic.
    a1, a2, a3, a4, a5 = (0.254829592, -0.284496736, 1.421413741,
                          -1.453152027, 1.061405429)
    p = 0.3275911
    s = jnp.where(x >= 0, 1.0, -1.0)
    ax = jnp.abs(x)
    t = 1.0 / (1.0 + p * ax)
    poly = ((((a5 * t + a4) * t + a3) * t + a2) * t + a1) * t
    return s * (1.0 - poly * jnp.exp(-ax * ax))


def _gelu_exact(x):
    # Matches torch.nn.GELU() (erf form) to ~1e-7.
    return 0.5 * x * (1.0 + _erf(x * (1.0 / math.sqrt(2.0))))


def cross_attention_kernel(
    x_ref, ctx_ref,
    wq_ref, bq_ref, wk_ref, bk_ref, wv_ref, bv_ref, wo_ref, bo_ref,
    g1_ref, be1_ref, gc_ref, bec_ref, g2_ref, be2_ref,
    wf1_ref, bf1_ref, wf2_ref, bf2_ref,
    out_ref,
    x2_s,        # VMEM (mq, D) f32  -- attention output + residual 1
    xn2_s,       # VMEM (mq, D) bf16 -- LayerNorm2 output (FFN LHS)
    ffn_acc_s,   # VMEM (mq, D) f32  -- FFN second-matmul accumulator
    *, heads, head_dim,
):
    bt, nq, d = x_ref.shape
    _, nk, _ = ctx_ref.shape
    mq = bt * nq
    mk = bt * nk
    j = pl.program_id(1)

    # ---- stage 1 (once per batch tile): attention + residual + LN2 ----
    @pl.when(j == 0)
    def _attention_and_ln2():
        x = x_ref[...].reshape(mq, d)          # flatten batch into matmul M
        ctx = ctx_ref[...].reshape(mk, d)

        xn = _layer_norm(x, g1_ref[...], be1_ref[...])
        cn = _layer_norm(ctx, gc_ref[...], bec_ref[...])
        xb = xn.astype(jnp.bfloat16)
        cb = cn.astype(jnp.bfloat16)

        # Projections: bf16 operands, f32 MXU accumulation.
        q = jnp.dot(xb, wq_ref[...], preferred_element_type=jnp.float32) + bq_ref[...]
        k = jnp.dot(cb, wk_ref[...], preferred_element_type=jnp.float32) + bk_ref[...]
        v = jnp.dot(cb, wv_ref[...], preferred_element_type=jnp.float32) + bv_ref[...]

        scale = 1.0 / (head_dim ** 0.5)        # fold 1/sqrt(hd) into q
        q3 = (q * scale).astype(jnp.bfloat16).reshape(bt, nq, d)
        k3 = k.astype(jnp.bfloat16).reshape(bt, nk, d)
        v3 = v.astype(jnp.bfloat16).reshape(bt, nk, d)

        # Per-head attention with the out-projection folded into the head
        # loop:  x2 = x + bo + sum_h softmax(q_h k_h^T) v_h @ wo[h*hd:(h+1)*hd]
        # -> every store is a lane-dense full-width (mq, D) scratch write.
        x2_s[...] = x + bo_ref[...]            # residual 1 + out-proj bias
        for h in range(heads):
            sl = slice(h * head_dim, (h + 1) * head_dim)
            s = jnp.einsum("bqd,bkd->bqk", q3[:, :, sl], k3[:, :, sl],
                           preferred_element_type=jnp.float32)
            s = s - jnp.max(s, axis=-1, keepdims=True)
            e = jnp.exp(s)
            p = e / jnp.sum(e, axis=-1, keepdims=True)     # exact softmax
            oh = jnp.einsum("bqk,bkd->bqd", p.astype(jnp.bfloat16), v3[:, :, sl],
                            preferred_element_type=jnp.float32)
            x2_s[...] += jnp.dot(
                oh.reshape(mq, head_dim).astype(jnp.bfloat16),
                wo_ref[sl, :], preferred_element_type=jnp.float32)
        # TODO(synk): for large head counts, stage q/k/v head-major and use
        # lax.fori_loop to bound live ranges of this unrolled loop.

        x2 = x2_s[...]
        xn2_s[...] = _layer_norm(x2, g2_ref[...], be2_ref[...]).astype(jnp.bfloat16)
        ffn_acc_s[...] = jnp.zeros_like(ffn_acc_s)

    # ---- stage 2 (every Dff tile): streamed feed-forward ----
    h1 = (jnp.dot(xn2_s[...], wf1_ref[...], preferred_element_type=jnp.float32)
          + bf1_ref[...])
    h1 = _gelu_exact(h1)                                   # exact GELU, f32
    ffn_acc_s[...] += jnp.dot(h1.astype(jnp.bfloat16), wf2_ref[...],
                              preferred_element_type=jnp.float32)

    @pl.when(j == pl.num_programs(1) - 1)
    def _finalize():
        out = ffn_acc_s[...] + bf2_ref[...] + x2_s[...]    # ffn bias + residual 2
        out_ref[...] = out.reshape(bt, nq, d).astype(out_ref.dtype)


# ---------------------------------------------------------------------------
# Tiling / wrapper
# ---------------------------------------------------------------------------

def _vmem_capacity_bytes(default=64 * 1024 * 1024):
    # Capability probe only (never guards kernel compilation).
    try:
        cap = getattr(pltpu.get_tpu_info(), "vmem_capacity_bytes", None)
        if cap:
            return int(cap)
    except Exception:
        pass
    return default


def _pick_dff_tile(dff):
    # 256-aligned Dff tiles (MXU-friendly on v6e/v7x); stream if Dff is large.
    if dff <= 1024:
        return dff
    for cand in (1024, 768, 512, 256):
        if dff % cand == 0:
            return cand
    return dff


def _vmem_estimate(bt, nq, nk, d, tdff):
    mq, mk = bt * nq, bt * nk
    scratch = mq * d * (4 + 2 + 4)                           # x2, xn2(bf16), acc
    io = 2 * (mq * d * 4 + mk * d * 4) + 2 * mq * d * 4      # double-buffered x/ctx/out
    weights = 2 * (4 * d * d * 2 + 2 * d * tdff * 2 + 16 * d * 4)
    acts = (3 * mq + 2 * mk) * d * 4 + 2 * mq * max(d, tdff) * 4
    return scratch + io + weights + acts


def _pick_batch_tile(B, nq, nk, d, tdff, vmem_cap):
    # Taller M on big-VMEM chips (v5e/v6e: 128 MiB) vs v7x (64 MiB).
    rows_target = 512 if vmem_cap >= 96 * 1024 * 1024 else 256
    bt = max(1, min(B, rows_target // max(nq, 1)))
    if B >= 2:
        bt = min(bt, -(-B // 2))        # keep >= 2 grid steps (v7x has 2 TCs)
    budget = int(0.55 * vmem_cap)
    while bt > 1 and _vmem_estimate(bt, nq, nk, d, tdff) > budget:
        bt -= 1
    return bt


def prepare_params(params):
    """One-time cast: matmul weights -> bf16, biases / LN params -> f32.

    Call once outside the per-step path so no f32->bf16 weight converts run
    per forward call."""
    out = {}
    for k, v in params.items():
        out[k] = jnp.asarray(v, jnp.bfloat16 if k.startswith("w") else jnp.float32)
    return out


def cross_attention_layer(x, context, params, *, heads):
    B, Nq, D = x.shape
    Bc, Nk, Dc = context.shape
    assert D % heads == 0 and Bc == B and Dc == D
    head_dim = D // heads
    Dff = params["wf1"].shape[1]

    vmem_cap = _vmem_capacity_bytes()
    tdff = _pick_dff_tile(Dff)
    ndff = Dff // tdff
    bt = _pick_batch_tile(B, Nq, Nk, D, tdff, vmem_cap)

    # Pad batch to a multiple of bt (handles prime/odd B without bt=1).
    nbt = -(-B // bt)
    Bpad = nbt * bt
    if Bpad != B:
        x = jnp.pad(x, ((0, Bpad - B), (0, 0), (0, 0)))
        context = jnp.pad(context, ((0, Bpad - B), (0, 0), (0, 0)))
    grid = (nbt, ndff)

    wdt, f32 = jnp.bfloat16, jnp.float32
    w = lambda name: params[name].astype(wdt)   # no-op if prepare_params used
    b = lambda name: params[name].astype(f32)

    args = (
        x, context,
        w("wq"), b("bq"), w("wk"), b("bk"), w("wv"), b("bv"), w("wo"), b("bo"),
        b("g1"), b("be1"), b("gc"), b("bec"), b("g2"), b("be2"),
        w("wf1"), b("bf1"), w("wf2"), b("bf2"),
    )

    const2 = lambda shape: pl.BlockSpec(shape, lambda i, j: (0, 0))
    in_specs = [
        pl.BlockSpec((bt, Nq, D), lambda i, j: (i, 0, 0)),   # x
        pl.BlockSpec((bt, Nk, D), lambda i, j: (i, 0, 0)),   # context
        const2((D, D)), const2((1, D)),                      # wq, bq
        const2((D, D)), const2((1, D)),                      # wk, bk
        const2((D, D)), const2((1, D)),                      # wv, bv
        const2((D, D)), const2((1, D)),                      # wo, bo
        const2((1, D)), const2((1, D)),                      # norm1 gamma/beta
        const2((1, D)), const2((1, D)),                      # context_norm gamma/beta
        const2((1, D)), const2((1, D)),                      # norm2 gamma/beta
        pl.BlockSpec((D, tdff), lambda i, j: (0, j)),        # wf1 (streamed over Dff)
        pl.BlockSpec((1, tdff), lambda i, j: (0, j)),        # bf1
        pl.BlockSpec((tdff, D), lambda i, j: (j, 0)),        # wf2 (streamed over Dff)
        const2((1, D)),                                      # bf2
    ]
    out_specs = pl.BlockSpec((bt, Nq, D), lambda i, j: (i, 0, 0))

    est = _vmem_estimate(bt, Nq, Nk, D, tdff)
    vmem_limit = int(min(0.85 * vmem_cap, max(32 * 1024 * 1024, 1.5 * est)))

    flops = 2 * B * (2 * Nq * D * D + 2 * Nk * D * D + 2 * Nq * Nk * D
                     + 2 * Nq * D * Dff)
    transcendentals = B * (heads * Nq * Nk + Nq * Dff)
    bytes_accessed = (B * (2 * Nq + Nk) * D * 4
                      + (4 * D * D + 2 * D * Dff) * 2 + (8 * D + Dff) * 4)

    kernel = functools.partial(cross_attention_kernel,
                               heads=heads, head_dim=head_dim)
    out = pl.pallas_call(
        kernel,
        out_shape=jax.ShapeDtypeStruct((Bpad, Nq, D), x.dtype),
        grid_spec=pltpu.PrefetchScalarGridSpec(
            num_scalar_prefetch=0,
            grid=grid,
            in_specs=in_specs,
            out_specs=out_specs,
            scratch_shapes=[
                pltpu.VMEM((bt * Nq, D), jnp.float32),    # x2
                pltpu.VMEM((bt * Nq, D), jnp.bfloat16),   # xn2
                pltpu.VMEM((bt * Nq, D), jnp.float32),    # ffn accumulator
            ],
        ),
        compiler_params=pltpu.CompilerParams(
            dimension_semantics=("parallel", "arbitrary"),
            vmem_limit_bytes=vmem_limit,
        ),
        cost_estimate=pl.CostEstimate(
            flops=int(flops),
            transcendentals=int(transcendentals),
            bytes_accessed=int(bytes_accessed),
        ),
    )(*args)
    return out[:B]


# ---------------------------------------------------------------------------
# Pure-JAX reference + test
# ---------------------------------------------------------------------------

def reference(x, context, params, *, heads):
    B, Nq, D = x.shape
    hd = D // heads
    ln = lambda t, g, b: _layer_norm(t, g[0], b[0])

    residual = x
    xn = ln(x, params["g1"], params["be1"])
    cn = ln(context, params["gc"], params["bec"])
    q = xn @ params["wq"] + params["bq"][0]
    k = cn @ params["wk"] + params["bk"][0]
    v = cn @ params["wv"] + params["bv"][0]

    def split(t):
        B_, N_, _ = t.shape
        return t.reshape(B_, N_, heads, hd).transpose(0, 2, 1, 3)

    qh, kh, vh = split(q), split(k), split(v)
    scores = jnp.einsum("bhqd,bhkd->bhqk", qh, kh) / (hd ** 0.5)
    attn = jax.nn.softmax(scores, axis=-1)
    out = jnp.einsum("bhqk,bhkd->bhqd", attn, vh)
    out = out.transpose(0, 2, 1, 3).reshape(B, Nq, D)
    out = out @ params["wo"] + params["bo"][0]
    x2 = out + residual

    residual2 = x2
    xn2 = ln(x2, params["g2"], params["be2"])
    h1 = jax.nn.gelu(xn2 @ params["wf1"] + params["bf1"][0], approximate=False)
    h2 = h1 @ params["wf2"] + params["bf2"][0]
    return h2 + residual2


def init_params(key, dim):
    dff = dim * 4
    ks = jax.random.split(key, 12)
    s = 0.05
    return {
        "wq": s * jax.random.normal(ks[0], (dim, dim), jnp.float32),
        "bq": s * jax.random.normal(ks[1], (1, dim), jnp.float32),
        "wk": s * jax.random.normal(ks[2], (dim, dim), jnp.float32),
        "bk": s * jax.random.normal(ks[3], (1, dim), jnp.float32),
        "wv": s * jax.random.normal(ks[4], (dim, dim), jnp.float32),
        "bv": s * jax.random.normal(ks[5], (1, dim), jnp.float32),
        "wo": s * jax.random.normal(ks[6], (dim, dim), jnp.float32),
        "bo": s * jax.random.normal(ks[7], (1, dim), jnp.float32),
        "g1": jnp.ones((1, dim), jnp.float32),
        "be1": jnp.zeros((1, dim), jnp.float32),
        "gc": jnp.ones((1, dim), jnp.float32),
        "bec": jnp.zeros((1, dim), jnp.float32),
        "g2": jnp.ones((1, dim), jnp.float32),
        "be2": jnp.zeros((1, dim), jnp.float32),
        "wf1": s * jax.random.normal(ks[8], (dim, dff), jnp.float32),
        "bf1": s * jax.random.normal(ks[9], (1, dff), jnp.float32),
        "wf2": s * jax.random.normal(ks[10], (dff, dim), jnp.float32),
        "bf2": s * jax.random.normal(ks[11], (1, dim), jnp.float32),
    }


if __name__ == "__main__":
    B, Nq, Nk, D, H = 2, 16, 8, 32, 4   # dim % heads == 0

    key = jax.random.PRNGKey(0)
    kx, kc, kp = jax.random.split(key, 3)
    x = jax.random.normal(kx, (B, Nq, D), jnp.float32)
    context = jax.random.normal(kc, (B, Nk, D), jnp.float32)
    params = init_params(kp, D)

    kparams = prepare_params(params)     # one-time bf16 weight cast
    fwd = jax.jit(functools.partial(cross_attention_layer, heads=H))
    out = jax.block_until_ready(fwd(x, context, kparams))
    ref = jax.block_until_ready(reference(x, context, params, heads=H))

    assert out.shape == (B, Nq, D)
    err = float(jnp.max(jnp.abs(out - ref)))
    # bf16 MXU operands => slightly looser tolerance vs the f32 reference.
    assert jnp.allclose(out, ref, atol=2e-2, rtol=2e-2), \
        f"mismatch vs reference, max abs err={err}"
    print("KERNEL_OK")
</pallas_src>

<mosaic_0001>
module attributes {stable_mosaic.version = 11 : i64} {
  func.func @cross_attention_kernel(%arg0: i32, %arg1: i32, %arg2: memref<1x16x32xf32, #tpu.memory_space<vmem>>, %arg3: memref<1x8x32xf32, #tpu.memory_space<vmem>>, %arg4: memref<32x32xbf16, #tpu.memory_space<vmem>>, %arg5: memref<1x32xf32, #tpu.memory_space<vmem>>, %arg6: memref<32x32xbf16, #tpu.memory_space<vmem>>, %arg7: memref<1x32xf32, #tpu.memory_space<vmem>>, %arg8: memref<32x32xbf16, #tpu.memory_space<vmem>>, %arg9: memref<1x32xf32, #tpu.memory_space<vmem>>, %arg10: memref<32x32xbf16, #tpu.memory_space<vmem>>, %arg11: memref<1x32xf32, #tpu.memory_space<vmem>>, %arg12: memref<1x32xf32, #tpu.memory_space<vmem>>, %arg13: memref<1x32xf32, #tpu.memory_space<vmem>>, %arg14: memref<1x32xf32, #tpu.memory_space<vmem>>, %arg15: memref<1x32xf32, #tpu.memory_space<vmem>>, %arg16: memref<1x32xf32, #tpu.memory_space<vmem>>, %arg17: memref<1x32xf32, #tpu.memory_space<vmem>>, %arg18: memref<32x128xbf16, #tpu.memory_space<vmem>>, %arg19: memref<1x128xf32, #tpu.memory_space<vmem>>, %arg20: memref<128x32xbf16, #tpu.memory_space<vmem>>, %arg21: memref<1x32xf32, #tpu.memory_space<vmem>>, %arg22: memref<1x16x32xf32, #tpu.memory_space<vmem>>, %arg23: memref<16x32xf32, #tpu.memory_space<vmem>>, %arg24: memref<16x32xbf16, #tpu.memory_space<vmem>>, %arg25: memref<16x32xf32, #tpu.memory_space<vmem>>) attributes {dimension_semantics = [#tpu.dimension_semantics<parallel>, #tpu.dimension_semantics<arbitrary>], iteration_bounds = array<i64: 2, 1>, scalar_prefetch = 0 : i64, scratch_operands = 3 : i64, tpu.core_type = #tpu.core_type<tc>, window_params = [{transform_indices = @transform_0, window_bounds = array<i64: 1, 16, 32>}, {transform_indices = @transform_1, window_bounds = array<i64: 1, 8, 32>}, {pipeline_mode = #tpu.pipeline_mode<synchronous>, transform_indices = @transform_2, window_bounds = array<i64: 32, 32>}, {pipeline_mode = #tpu.pipeline_mode<synchronous>, transform_indices = @transform_3, window_bounds = array<i64: 1, 32>}, {pipeline_mode = #tpu.pipeline_mode<synchronous>, transform_indices = @transform_4, window_bounds = array<i64: 32, 32>}, {pipeline_mode = #tpu.pipeline_mode<synchronous>, transform_indices = @transform_5, window_bounds = array<i64: 1, 32>}, {pipeline_mode = #tpu.pipeline_mode<synchronous>, transform_indices = @transform_6, window_bounds = array<i64: 32, 32>}, {pipeline_mode = #tpu.pipeline_mode<synchronous>, transform_indices = @transform_7, window_bounds = array<i64: 1, 32>}, {pipeline_mode = #tpu.pipeline_mode<synchronous>, transform_indices = @transform_8, window_bounds = array<i64: 32, 32>}, {pipeline_mode = #tpu.pipeline_mode<synchronous>, transform_indices = @transform_9, window_bounds = array<i64: 1, 32>}, {pipeline_mode = #tpu.pipeline_mode<synchronous>, transform_indices = @transform_10, window_bounds = array<i64: 1, 32>}, {pipeline_mode = #tpu.pipeline_mode<synchronous>, transform_indices = @transform_11, window_bounds = array<i64: 1, 32>}, {pipeline_mode = #tpu.pipeline_mode<synchronous>, transform_indices = @transform_12, window_bounds = array<i64: 1, 32>}, {pipeline_mode = #tpu.pipeline_mode<synchronous>, transform_indices = @transform_13, window_bounds = array<i64: 1, 32>}, {pipeline_mode = #tpu.pipeline_mode<synchronous>, transform_indices = @transform_14, window_bounds = array<i64: 1, 32>}, {pipeline_mode = #tpu.pipeline_mode<synchronous>, transform_indices = @transform_15, window_bounds = array<i64: 1, 32>}, {transform_indices = @transform_16, window_bounds = array<i64: 32, 128>}, {transform_indices = @transform_17, window_bounds = array<i64: 1, 128>}, {transform_indices = @transform_18, window_bounds = array<i64: 128, 32>}, {pipeline_mode = #tpu.pipeline_mode<synchronous>, transform_indices = @transform_19, window_bounds = array<i64: 1, 32>}, {transform_indices = @transform_20, window_bounds = array<i64: 1, 16, 32>}]} {
    %c0_i32 = arith.constant 0 : i32
    %0 = arith.cmpi eq, %arg1, %c0_i32 : i32
    %1 = arith.extui %0 : i1 to i32
    %c0_i32_0 = arith.constant 0 : i32
    %2 = arith.cmpi ne, %1, %c0_i32_0 : i32
    scf.if %2 {
      %c0_31 = arith.constant 0 : index
      %c0_32 = arith.constant 0 : index
      %c0_33 = arith.constant 0 : index
      %59 = vector.load %arg2[%c0_31, %c0_32, %c0_33] : memref<1x16x32xf32, #tpu.memory_space<vmem>>, vector<1x16x32xf32>
      %60 = vector.shape_cast %59 : vector<1x16x32xf32> to vector<16x32xf32>
      %c0_34 = arith.constant 0 : index
      %c0_35 = arith.constant 0 : index
      %c0_36 = arith.constant 0 : index
      %61 = vector.load %arg3[%c0_34, %c0_35, %c0_36] : memref<1x8x32xf32, #tpu.memory_space<vmem>>, vector<1x8x32xf32>
      %62 = vector.shape_cast %61 : vector<1x8x32xf32> to vector<8x32xf32>
      %c0_37 = arith.constant 0 : index
      %c0_38 = arith.constant 0 : index
      %63 = vector.load %arg12[%c0_37, %c0_38] : memref<1x32xf32, #tpu.memory_space<vmem>>, vector<1x32xf32>
      %c0_39 = arith.constant 0 : index
      %c0_40 = arith.constant 0 : index
      %64 = vector.load %arg13[%c0_39, %c0_40] : memref<1x32xf32, #tpu.memory_space<vmem>>, vector<1x32xf32>
      %cst_41 = arith.constant dense<0.000000e+00> : vector<16xf32>
      %65 = vector.multi_reduction <add>, %60, %cst_41 [1] : vector<16x32xf32> to vector<16xf32>
      %66 = vector.shape_cast %65 : vector<16xf32> to vector<16x1xf32>
      %cst_42 = arith.constant 3.200000e+01 : f32
      %67 = vector.broadcast %cst_42 : f32 to vector<16x1xf32>
      %68 = arith.divf %66, %67 : vector<16x1xf32>
      %69 = vector.broadcast %68 : vector<16x1xf32> to vector<16x32xf32>
      %70 = arith.subf %60, %69 : vector<16x32xf32>
      %71 = arith.mulf %70, %70 : vector<16x32xf32>
      %cst_43 = arith.constant dense<0.000000e+00> : vector<16xf32>
      %72 = vector.multi_reduction <add>, %71, %cst_43 [1] : vector<16x32xf32> to vector<16xf32>
      %73 = vector.shape_cast %72 : vector<16xf32> to vector<16x1xf32>
      %cst_44 = arith.constant 3.200000e+01 : f32
      %74 = vector.broadcast %cst_44 : f32 to vector<16x1xf32>
      %75 = arith.divf %73, %74 : vector<16x1xf32>
      %76 = vector.broadcast %68 : vector<16x1xf32> to vector<16x32xf32>
      %77 = arith.subf %60, %76 : vector<16x32xf32>
      %cst_45 = arith.constant 9.99999974E-6 : f32
      %78 = vector.broadcast %cst_45 : f32 to vector<16x1xf32>
      %79 = arith.addf %75, %78 : vector<16x1xf32>
      %80 = math.rsqrt %79 : vector<16x1xf32>
      %81 = vector.broadcast %80 : vector<16x1xf32> to vector<16x32xf32>
      %82 = arith.mulf %77, %81 : vector<16x32xf32>
      %83 = vector.broadcast %63 : vector<1x32xf32> to vector<16x32xf32>
      %84 = arith.mulf %82, %83 : vector<16x32xf32>
      %85 = vector.broadcast %64 : vector<1x32xf32> to vector<16x32xf32>
      %86 = arith.addf %84, %85 : vector<16x32xf32>
      %c0_46 = arith.constant 0 : index
      %c0_47 = arith.constant 0 : index
      %87 = vector.load %arg14[%c0_46, %c0_47] : memref<1x32xf32, #tpu.memory_space<vmem>>, vector<1x32xf32>
      %c0_48 = arith.constant 0 : index
      %c0_49 = arith.constant 0 : index
      %88 = vector.load %arg15[%c0_48, %c0_49] : memref<1x32xf32, #tpu.memory_space<vmem>>, vector<1x32xf32>
      %cst_50 = arith.constant dense<0.000000e+00> : vector<8xf32>
      %89 = vector.multi_reduction <add>, %62, %cst_50 [1] : vector<8x32xf32> to vector<8xf32>
      %90 = vector.shape_cast %89 : vector<8xf32> to vector<8x1xf32>
      %cst_51 = arith.constant 3.200000e+01 : f32
      %91 = vector.broadcast %cst_51 : f32 to vector<8x1xf32>
      %92 = arith.divf %90, %91 : vector<8x1xf32>
      %93 = vector.broadcast %92 : vector<8x1xf32> to vector<8x32xf32>
      %94 = arith.subf %62, %93 : vector<8x32xf32>
      %95 = arith.mulf %94, %94 : vector<8x32xf32>
      %cst_52 = arith.constant dense<0.000000e+00> : vector<8xf32>
      %96 = vector.multi_reduction <add>, %95, %cst_52 [1] : vector<8x32xf32> to vector<8xf32>
      %97 = vector.shape_cast %96 : vector<8xf32> to vector<8x1xf32>
      %cst_53 = arith.constant 3.200000e+01 : f32
      %98 = vector.broadcast %cst_53 : f32 to vector<8x1xf32>
      %99 = arith.divf %97, %98 : vector<8x1xf32>
      %100 = vector.broadcast %92 : vector<8x1xf32> to vector<8x32xf32>
      %101 = arith.subf %62, %100 : vector<8x32xf32>
      %cst_54 = arith.constant 9.99999974E-6 : f32
      %102 = vector.broadcast %cst_54 : f32 to vector<8x1xf32>
      %103 = arith.addf %99, %102 : vector<8x1xf32>
      %104 = math.rsqrt %103 : vector<8x1xf32>
      %105 = vector.broadcast %104 : vector<8x1xf32> to vector<8x32xf32>
      %106 = arith.mulf %101, %105 : vector<8x32xf32>
      %107 = vector.broadcast %87 : vector<1x32xf32> to vector<8x32xf32>
      %108 = arith.mulf %106, %107 : vector<8x32xf32>
      %109 = vector.broadcast %88 : vector<1x32xf32> to vector<8x32xf32>
      %110 = arith.addf %108, %109 : vector<8x32xf32>
      %111 = arith.truncf %86 : vector<16x32xf32> to vector<16x32xbf16>
      %112 = arith.truncf %110 : vector<8x32xf32> to vector<8x32xbf16>
      %c0_55 = arith.constant 0 : index
      %c0_56 = arith.constant 0 : index
      %113 = vector.load %arg4[%c0_55, %c0_56] : memref<32x32xbf16, #tpu.memory_space<vmem>>, vector<32x32xbf16>
      %cst_57 = arith.constant dense<0.000000e+00> : vector<16x32xf32>
      %114 = tpu.matmul %111, %113, %cst_57 {dimension_numbers = #tpu.dot_dimension_numbers<[1], [0], [0], [1], [0, 0, 1, 1], [], []>} : vector<16x32xbf16>, vector<32x32xbf16>, vector<16x32xf32> -> vector<16x32xf32>
      %c0_58 = arith.constant 0 : index
      %c0_59 = arith.constant 0 : index
      %115 = vector.load %arg5[%c0_58, %c0_59] : memref<1x32xf32, #tpu.memory_space<vmem>>, vector<1x32xf32>
      %116 = vector.broadcast %115 : vector<1x32xf32> to vector<16x32xf32>
      %117 = arith.addf %114, %116 : vector<16x32xf32>
      %c0_60 = arith.constant 0 : index
      %c0_61 = arith.constant 0 : index
      %118 = vector.load %arg6[%c0_60, %c0_61] : memref<32x32xbf16, #tpu.memory_space<vmem>>, vector<32x32xbf16>
      %cst_62 = arith.constant dense<0.000000e+00> : vector<8x32xf32>
      %119 = tpu.matmul %112, %118, %cst_62 {dimension_numbers = #tpu.dot_dimension_numbers<[1], [0], [0], [1], [0, 0, 1, 1], [], []>} : vector<8x32xbf16>, vector<32x32xbf16>, vector<8x32xf32> -> vector<8x32xf32>
      %c0_63 = arith.constant 0 : index
      %c0_64 = arith.constant 0 : index
      %120 = vector.load %arg7[%c0_63, %c0_64] : memref<1x32xf32, #tpu.memory_space<vmem>>, vector<1x32xf32>
      %121 = vector.broadcast %120 : vector<1x32xf32> to vector<8x32xf32>
      %122 = arith.addf %119, %121 : vector<8x32xf32>
      %c0_65 = arith.constant 0 : index
      %c0_66 = arith.constant 0 : index
      %123 = vector.load %arg8[%c0_65, %c0_66] : memref<32x32xbf16, #tpu.memory_space<vmem>>, vector<32x32xbf16>
      %cst_67 = arith.constant dense<0.000000e+00> : vector<8x32xf32>
      %124 = tpu.matmul %112, %123, %cst_67 {dimension_numbers = #tpu.dot_dimension_numbers<[1], [0], [0], [1], [0, 0, 1, 1], [], []>} : vector<8x32xbf16>, vector<32x32xbf16>, vector<8x32xf32> -> vector<8x32xf32>
      %c0_68 = arith.constant 0 : index
      %c0_69 = arith.constant 0 : index
      %125 = vector.load %arg9[%c0_68, %c0_69] : memref<1x32xf32, #tpu.memory_space<vmem>>, vector<1x32xf32>
      %126 = vector.broadcast %125 : vector<1x32xf32> to vector<8x32xf32>
      %127 = arith.addf %124, %126 : vector<8x32xf32>
      %cst_70 = arith.constant 0.353553385 : f32
      %128 = vector.broadcast %cst_70 : f32 to vector<16x32xf32>
      %129 = arith.mulf %117, %128 : vector<16x32xf32>
      %130 = arith.truncf %129 : vector<16x32xf32> to vector<16x32xbf16>
      %131 = vector.shape_cast %130 : vector<16x32xbf16> to vector<1x16x32xbf16>
      %132 = arith.truncf %122 : vector<8x32xf32> to vector<8x32xbf16>
      %133 = vector.shape_cast %132 : vector<8x32xbf16> to vector<1x8x32xbf16>
      %134 = arith.truncf %127 : vector<8x32xf32> to vector<8x32xbf16>
      %135 = vector.shape_cast %134 : vector<8x32xbf16> to vector<1x8x32xbf16>
      %c0_71 = arith.constant 0 : index
      %c0_72 = arith.constant 0 : index
      %136 = vector.load %arg11[%c0_71, %c0_72] : memref<1x32xf32, #tpu.memory_space<vmem>>, vector<1x32xf32>
      %137 = vector.broadcast %136 : vector<1x32xf32> to vector<16x32xf32>
      %138 = arith.addf %60, %137 : vector<16x32xf32>
      %c0_73 = arith.constant 0 : index
      %c0_74 = arith.constant 0 : index
      %139 = vector.load %arg23[%c0_73, %c0_74] : memref<16x32xf32, #tpu.memory_space<vmem>>, vector<16x32xf32>
      tpu.vector_store %arg23[%c0_73, %c0_74], %138 {strides = array<i32>} : memref<16x32xf32, #tpu.memory_space<vmem>>, vector<16x32xf32>,
      %140 = vector.extract_strided_slice %131 {offsets = [0, 0, 0], sizes = [1, 16, 8], strides = [1, 1, 1]} : vector<1x16x32xbf16> to vector<1x16x8xbf16>
      %141 = vector.extract_strided_slice %133 {offsets = [0, 0, 0], sizes = [1, 8, 8], strides = [1, 1, 1]} : vector<1x8x32xbf16> to vector<1x8x8xbf16>
      "tpu.trace_start"() <{level = 10 : i32, message = "bqd,bkd->bqk"}> : () -> ()
      %cst_75 = arith.constant dense<0.000000e+00> : vector<1x16x8xf32>
      %142 = tpu.matmul %140, %141, %cst_75 {dimension_numbers = #tpu.dot_dimension_numbers<[2], [2], [1], [1], [0, 0, 0, 1, 1, 1], [0], [0]>} : vector<1x16x8xbf16>, vector<1x8x8xbf16>, vector<1x16x8xf32> -> vector<1x16x8xf32>
      "tpu.trace_stop"() : () -> ()
      %cst_76 = arith.constant dense<0xFF800000> : vector<1x16xf32>
      %143 = vector.multi_reduction <maximumf>, %142, %cst_76 [2] : vector<1x16x8xf32> to vector<1x16xf32>
      %144 = vector.shape_cast %143 : vector<1x16xf32> to vector<1x16x1xf32>
      %145 = vector.broadcast %144 : vector<1x16x1xf32> to vector<1x16x8xf32>
      %146 = arith.subf %142, %145 : vector<1x16x8xf32>
      %147 = math.exp %146 : vector<1x16x8xf32>
      %cst_77 = arith.constant dense<0.000000e+00> : vector<1x16xf32>
      %148 = vector.multi_reduction <add>, %147, %cst_77 [2] : vector<1x16x8xf32> to vector<1x16xf32>
      %149 = vector.shape_cast %148 : vector<1x16xf32> to vector<1x16x1xf32>
      %150 = vector.broadcast %149 : vector<1x16x1xf32> to vector<1x16x8xf32>
      %151 = arith.divf %147, %150 : vector<1x16x8xf32>
      %152 = arith.truncf %151 : vector<1x16x8xf32> to vector<1x16x8xbf16>
      %153 = vector.extract_strided_slice %135 {offsets = [0, 0, 0], sizes = [1, 8, 8], strides = [1, 1, 1]} : vector<1x8x32xbf16> to vector<1x8x8xbf16>
      "tpu.trace_start"() <{level = 10 : i32, message = "bqk,bkd->bqd"}> : () -> ()
      %cst_78 = arith.constant dense<0.000000e+00> : vector<1x16x8xf32>
      %154 = tpu.matmul %152, %153, %cst_78 {dimension_numbers = #tpu.dot_dimension_numbers<[2], [1], [1], [2], [0, 0, 0, 1, 1, 2], [0], [0]>} : vector<1x16x8xbf16>, vector<1x8x8xbf16>, vector<1x16x8xf32> -> vector<1x16x8xf32>
      "tpu.trace_stop"() : () -> ()
      %c0_79 = arith.constant 0 : index
      %c0_80 = arith.constant 0 : index
      %155 = vector.load %arg23[%c0_79, %c0_80] : memref<16x32xf32, #tpu.memory_space<vmem>>, vector<16x32xf32>
      %156 = vector.shape_cast %154 : vector<1x16x8xf32> to vector<16x8xf32>
      %157 = arith.truncf %156 : vector<16x8xf32> to vector<16x8xbf16>
      %c0_81 = arith.constant 0 : index
      %c0_82 = arith.constant 0 : index
      %158 = vector.load %arg10[%c0_81, %c0_82] : memref<32x32xbf16, #tpu.memory_space<vmem>>, vector<8x32xbf16>
      %cst_83 = arith.constant dense<0.000000e+00> : vector<16x32xf32>
      %159 = tpu.matmul %157, %158, %cst_83 {dimension_numbers = #tpu.dot_dimension_numbers<[1], [0], [0], [1], [0, 0, 1, 1], [], []>} : vector<16x8xbf16>, vector<8x32xbf16>, vector<16x32xf32> -> vector<16x32xf32>
      %160 = arith.addf %155, %159 : vector<16x32xf32>
      %c0_84 = arith.constant 0 : index
      %c0_85 = arith.constant 0 : index
      %161 = vector.load %arg23[%c0_84, %c0_85] : memref<16x32xf32, #tpu.memory_space<vmem>>, vector<16x32xf32>
      tpu.vector_store %arg23[%c0_84, %c0_85], %160 {strides = array<i32>} : memref<16x32xf32, #tpu.memory_space<vmem>>, vector<16x32xf32>,
      %162 = vector.extract_strided_slice %131 {offsets = [0, 0, 8], sizes = [1, 16, 8], strides = [1, 1, 1]} : vector<1x16x32xbf16> to vector<1x16x8xbf16>
      %163 = vector.extract_strided_slice %133 {offsets = [0, 0, 8], sizes = [1, 8, 8], strides = [1, 1, 1]} : vector<1x8x32xbf16> to vector<1x8x8xbf16>
      "tpu.trace_start"() <{level = 10 : i32, message = "bqd,bkd->bqk"}> : () -> ()
      %cst_86 = arith.constant dense<0.000000e+00> : vector<1x16x8xf32>
      %164 = tpu.matmul %162, %163, %cst_86 {dimension_numbers = #tpu.dot_dimension_numbers<[2], [2], [1], [1], [0, 0, 0, 1, 1, 1], [0], [0]>} : vector<1x16x8xbf16>, vector<1x8x8xbf16>, vector<1x16x8xf32> -> vector<1x16x8xf32>
      "tpu.trace_stop"() : () -> ()
      %cst_87 = arith.constant dense<0xFF800000> : vector<1x16xf32>
      %165 = vector.multi_reduction <maximumf>, %164, %cst_87 [2] : vector<1x16x8xf32> to vector<1x16xf32>
      %166 = vector.shape_cast %165 : vector<1x16xf32> to vector<1x16x1xf32>
      %167 = vector.broadcast %166 : vector<1x16x1xf32> to vector<1x16x8xf32>
      %168 = arith.subf %164, %167 : vector<1x16x8xf32>
      %169 = math.exp %168 : vector<1x16x8xf32>
      %cst_88 = arith.constant dense<0.000000e+00> : vector<1x16xf32>
      %170 = vector.multi_reduction <add>, %169, %cst_88 [2] : vector<1x16x8xf32> to vector<1x16xf32>
      %171 = vector.shape_cast %170 : vector<1x16xf32> to vector<1x16x1xf32>
      %172 = vector.broadcast %171 : vector<1x16x1xf32> to vector<1x16x8xf32>
      %173 = arith.divf %169, %172 : vector<1x16x8xf32>
      %174 = arith.truncf %173 : vector<1x16x8xf32> to vector<1x16x8xbf16>
      %175 = vector.extract_strided_slice %135 {offsets = [0, 0, 8], sizes = [1, 8, 8], strides = [1, 1, 1]} : vector<1x8x32xbf16> to vector<1x8x8xbf16>
      "tpu.trace_start"() <{level = 10 : i32, message = "bqk,bkd->bqd"}> : () -> ()
      %cst_89 = arith.constant dense<0.000000e+00> : vector<1x16x8xf32>
      %176 = tpu.matmul %174, %175, %cst_89 {dimension_numbers = #tpu.dot_dimension_numbers<[2], [1], [1], [2], [0, 0, 0, 1, 1, 2], [0], [0]>} : vector<1x16x8xbf16>, vector<1x8x8xbf16>, vector<1x16x8xf32> -> vector<1x16x8xf32>
      "tpu.trace_stop"() : () -> ()
      %c0_90 = arith.constant 0 : index
      %c0_91 = arith.constant 0 : index
      %177 = vector.load %arg23[%c0_90, %c0_91] : memref<16x32xf32, #tpu.memory_space<vmem>>, vector<16x32xf32>
      %178 = vector.shape_cast %176 : vector<1x16x8xf32> to vector<16x8xf32>
      %179 = arith.truncf %178 : vector<16x8xf32> to vector<16x8xbf16>
      %c8 = arith.constant 8 : index
      %c0_92 = arith.constant 0 : index
      %180 = vector.load %arg10[%c8, %c0_92] : memref<32x32xbf16, #tpu.memory_space<vmem>>, vector<8x32xbf16>
      %cst_93 = arith.constant dense<0.000000e+00> : vector<16x32xf32>
      %181 = tpu.matmul %179, %180, %cst_93 {dimension_numbers = #tpu.dot_dimension_numbers<[1], [0], [0], [1], [0, 0, 1, 1], [], []>} : vector<16x8xbf16>, vector<8x32xbf16>, vector<16x32xf32> -> vector<16x32xf32>
      %182 = arith.addf %177, %181 : vector<16x32xf32>
      %c0_94 = arith.constant 0 : index
      %c0_95 = arith.constant 0 : index
      %183 = vector.load %arg23[%c0_94, %c0_95] : memref<16x32xf32, #tpu.memory_space<vmem>>, vector<16x32xf32>
      tpu.vector_store %arg23[%c0_94, %c0_95], %182 {strides = array<i32>} : memref<16x32xf32, #tpu.memory_space<vmem>>, vector<16x32xf32>,
      %184 = vector.extract_strided_slice %131 {offsets = [0, 0, 16], sizes = [1, 16, 8], strides = [1, 1, 1]} : vector<1x16x32xbf16> to vector<1x16x8xbf16>
      %185 = vector.extract_strided_slice %133 {offsets = [0, 0, 16], sizes = [1, 8, 8], strides = [1, 1, 1]} : vector<1x8x32xbf16> to vector<1x8x8xbf16>
      "tpu.trace_start"() <{level = 10 : i32, message = "bqd,bkd->bqk"}> : () -> ()
      %cst_96 = arith.constant dense<0.000000e+00> : vector<1x16x8xf32>
      %186 = tpu.matmul %184, %185, %cst_96 {dimension_numbers = #tpu.dot_dimension_numbers<[2], [2], [1], [1], [0, 0, 0, 1, 1, 1], [0], [0]>} : vector<1x16x8xbf16>, vector<1x8x8xbf16>, vector<1x16x8xf32> -> vector<1x16x8xf32>
      "tpu.trace_stop"() : () -> ()
      %cst_97 = arith.constant dense<0xFF800000> : vector<1x16xf32>
      %187 = vector.multi_reduction <maximumf>, %186, %cst_97 [2] : vector<1x16x8xf32> to vector<1x16xf32>
      %188 = vector.shape_cast %187 : vector<1x16xf32> to vector<1x16x1xf32>
      %189 = vector.broadcast %188 : vector<1x16x1xf32> to vector<1x16x8xf32>
      %190 = arith.subf %186, %189 : vector<1x16x8xf32>
      %191 = math.exp %190 : vector<1x16x8xf32>
      %cst_98 = arith.constant dense<0.000000e+00> : vector<1x16xf32>
      %192 = vector.multi_reduction <add>, %191, %cst_98 [2] : vector<1x16x8xf32> to vector<1x16xf32>
      %193 = vector.shape_cast %192 : vector<1x16xf32> to vector<1x16x1xf32>
      %194 = vector.broadcast %193 : vector<1x16x1xf32> to vector<1x16x8xf32>
      %195 = arith.divf %191, %194 : vector<1x16x8xf32>
      %196 = arith.truncf %195 : vector<1x16x8xf32> to vector<1x16x8xbf16>
      %197 = vector.extract_strided_slice %135 {offsets = [0, 0, 16], sizes = [1, 8, 8], strides = [1, 1, 1]} : vector<1x8x32xbf16> to vector<1x8x8xbf16>
      "tpu.trace_start"() <{level = 10 : i32, message = "bqk,bkd->bqd"}> : () -> ()
      %cst_99 = arith.constant dense<0.000000e+00> : vector<1x16x8xf32>
      %198 = tpu.matmul %196, %197, %cst_99 {dimension_numbers = #tpu.dot_dimension_numbers<[2], [1], [1], [2], [0, 0, 0, 1, 1, 2], [0], [0]>} : vector<1x16x8xbf16>, vector<1x8x8xbf16>, vector<1x16x8xf32> -> vector<1x16x8xf32>
      "tpu.trace_stop"() : () -> ()
      %c0_100 = arith.constant 0 : index
      %c0_101 = arith.constant 0 : index
      %199 = vector.load %arg23[%c0_100, %c0_101] : memref<16x32xf32, #tpu.memory_space<vmem>>, vector<16x32xf32>
      %200 = vector.shape_cast %198 : vector<1x16x8xf32> to vector<16x8xf32>
      %201 = arith.truncf %200 : vector<16x8xf32> to vector<16x8xbf16>
      %c16 = arith.constant 16 : index
      %c0_102 = arith.constant 0 : index
      %202 = vector.load %arg10[%c16, %c0_102] : memref<32x32xbf16, #tpu.memory_space<vmem>>, vector<8x32xbf16>
      %cst_103 = arith.constant dense<0.000000e+00> : vector<16x32xf32>
      %203 = tpu.matmul %201, %202, %cst_103 {dimension_numbers = #tpu.dot_dimension_numbers<[1], [0], [0], [1], [0, 0, 1, 1], [], []>} : vector<16x8xbf16>, vector<8x32xbf16>, vector<16x32xf32> -> vector<16x32xf32>
      %204 = arith.addf %199, %203 : vector<16x32xf32>
      %c0_104 = arith.constant 0 : index
      %c0_105 = arith.constant 0 : index
      %205 = vector.load %arg23[%c0_104, %c0_105] : memref<16x32xf32, #tpu.memory_space<vmem>>, vector<16x32xf32>
      tpu.vector_store %arg23[%c0_104, %c0_105], %204 {strides = array<i32>} : memref<16x32xf32, #tpu.memory_space<vmem>>, vector<16x32xf32>,
      %206 = vector.extract_strided_slice %131 {offsets = [0, 0, 24], sizes = [1, 16, 8], strides = [1, 1, 1]} : vector<1x16x32xbf16> to vector<1x16x8xbf16>
      %207 = vector.extract_strided_slice %133 {offsets = [0, 0, 24], sizes = [1, 8, 8], strides = [1, 1, 1]} : vector<1x8x32xbf16> to vector<1x8x8xbf16>
      "tpu.trace_start"() <{level = 10 : i32, message = "bqd,bkd->bqk"}> : () -> ()
      %cst_106 = arith.constant dense<0.000000e+00> : vector<1x16x8xf32>
      %208 = tpu.matmul %206, %207, %cst_106 {dimension_numbers = #tpu.dot_dimension_numbers<[2], [2], [1], [1], [0, 0, 0, 1, 1, 1], [0], [0]>} : vector<1x16x8xbf16>, vector<1x8x8xbf16>, vector<1x16x8xf32> -> vector<1x16x8xf32>
      "tpu.trace_stop"() : () -> ()
      %cst_107 = arith.constant dense<0xFF800000> : vector<1x16xf32>
      %209 = vector.multi_reduction <maximumf>, %208, %cst_107 [2] : vector<1x16x8xf32> to vector<1x16xf32>
      %210 = vector.shape_cast %209 : vector<1x16xf32> to vector<1x16x1xf32>
      %211 = vector.broadcast %210 : vector<1x16x1xf32> to vector<1x16x8xf32>
      %212 = arith.subf %208, %211 : vector<1x16x8xf32>
      %213 = math.exp %212 : vector<1x16x8xf32>
      %cst_108 = arith.constant dense<0.000000e+00> : vector<1x16xf32>
      %214 = vector.multi_reduction <add>, %213, %cst_108 [2] : vector<1x16x8xf32> to vector<1x16xf32>
      %215 = vector.shape_cast %214 : vector<1x16xf32> to vector<1x16x1xf32>
      %216 = vector.broadcast %215 : vector<1x16x1xf32> to vector<1x16x8xf32>
      %217 = arith.divf %213, %216 : vector<1x16x8xf32>
      %218 = arith.truncf %217 : vector<1x16x8xf32> to vector<1x16x8xbf16>
      %219 = vector.extract_strided_slice %135 {offsets = [0, 0, 24], sizes = [1, 8, 8], strides = [1, 1, 1]} : vector<1x8x32xbf16> to vector<1x8x8xbf16>
      "tpu.trace_start"() <{level = 10 : i32, message = "bqk,bkd->bqd"}> : () -> ()
      %cst_109 = arith.constant dense<0.000000e+00> : vector<1x16x8xf32>
      %220 = tpu.matmul %218, %219, %cst_109 {dimension_numbers = #tpu.dot_dimension_numbers<[2], [1], [1], [2], [0, 0, 0, 1, 1, 2], [0], [0]>} : vector<1x16x8xbf16>, vector<1x8x8xbf16>, vector<1x16x8xf32> -> vector<1x16x8xf32>
      "tpu.trace_stop"() : () -> ()
      %c0_110 = arith.constant 0 : index
      %c0_111 = arith.constant 0 : index
      %221 = vector.load %arg23[%c0_110, %c0_111] : memref<16x32xf32, #tpu.memory_space<vmem>>, vector<16x32xf32>
      %222 = vector.shape_cast %220 : vector<1x16x8xf32> to vector<16x8xf32>
      %223 = arith.truncf %222 : vector<16x8xf32> to vector<16x8xbf16>
      %c24 = arith.constant 24 : index
      %c0_112 = arith.constant 0 : index
      %224 = vector.load %arg10[%c24, %c0_112] : memref<32x32xbf16, #tpu.memory_space<vmem>>, vector<8x32xbf16>
      %cst_113 = arith.constant dense<0.000000e+00> : vector<16x32xf32>
      %225 = tpu.matmul %223, %224, %cst_113 {dimension_numbers = #tpu.dot_dimension_numbers<[1], [0], [0], [1], [0, 0, 1, 1], [], []>} : vector<16x8xbf16>, vector<8x32xbf16>, vector<16x32xf32> -> vector<16x32xf32>
      %226 = arith.addf %221, %225 : vector<16x32xf32>
      %c0_114 = arith.constant 0 : index
      %c0_115 = arith.constant 0 : index
      %227 = vector.load %arg23[%c0_114, %c0_115] : memref<16x32xf32, #tpu.memory_space<vmem>>, vector<16x32xf32>
      tpu.vector_store %arg23[%c0_114, %c0_115], %226 {strides = array<i32>} : memref<16x32xf32, #tpu.memory_space<vmem>>, vector<16x32xf32>,
      %c0_116 = arith.constant 0 : index
      %c0_117 = arith.constant 0 : index
      %228 = vector.load %arg23[%c0_116, %c0_117] : memref<16x32xf32, #tpu.memory_space<vmem>>, vector<16x32xf32>
      %c0_118 = arith.constant 0 : index
      %c0_119 = arith.constant 0 : index
      %229 = vector.load %arg16[%c0_118, %c0_119] : memref<1x32xf32, #tpu.memory_space<vmem>>, vector<1x32xf32>
      %c0_120 = arith.constant 0 : index
      %c0_121 = arith.constant 0 : index
      %230 = vector.load %arg17[%c0_120, %c0_121] : memref<1x32xf32, #tpu.memory_space<vmem>>, vector<1x32xf32>
      %cst_122 = arith.constant dense<0.000000e+00> : vector<16xf32>
      %231 = vector.multi_reduction <add>, %228, %cst_122 [1] : vector<16x32xf32> to vector<16xf32>
      %232 = vector.shape_cast %231 : vector<16xf32> to vector<16x1xf32>
      %cst_123 = arith.constant 3.200000e+01 : f32
      %233 = vector.broadcast %cst_123 : f32 to vector<16x1xf32>
      %234 = arith.divf %232, %233 : vector<16x1xf32>
      %235 = vector.broadcast %234 : vector<16x1xf32> to vector<16x32xf32>
      %236 = arith.subf %228, %235 : vector<16x32xf32>
      %237 = arith.mulf %236, %236 : vector<16x32xf32>
      %cst_124 = arith.constant dense<0.000000e+00> : vector<16xf32>
      %238 = vector.multi_reduction <add>, %237, %cst_124 [1] : vector<16x32xf32> to vector<16xf32>
      %239 = vector.shape_cast %238 : vector<16xf32> to vector<16x1xf32>
      %cst_125 = arith.constant 3.200000e+01 : f32
      %240 = vector.broadcast %cst_125 : f32 to vector<16x1xf32>
      %241 = arith.divf %239, %240 : vector<16x1xf32>
      %242 = vector.broadcast %234 : vector<16x1xf32> to vector<16x32xf32>
      %243 = arith.subf %228, %242 : vector<16x32xf32>
      %cst_126 = arith.constant 9.99999974E-6 : f32
      %244 = vector.broadcast %cst_126 : f32 to vector<16x1xf32>
      %245 = arith.addf %241, %244 : vector<16x1xf32>
      %246 = math.rsqrt %245 : vector<16x1xf32>
      %247 = vector.broadcast %246 : vector<16x1xf32> to vector<16x32xf32>
      %248 = arith.mulf %243, %247 : vector<16x32xf32>
      %249 = vector.broadcast %229 : vector<1x32xf32> to vector<16x32xf32>
      %250 = arith.mulf %248, %249 : vector<16x32xf32>
      %251 = vector.broadcast %230 : vector<1x32xf32> to vector<16x32xf32>
      %252 = arith.addf %250, %251 : vector<16x32xf32>
      %253 = arith.truncf %252 : vector<16x32xf32> to vector<16x32xbf16>
      %c0_127 = arith.constant 0 : index
      %c0_128 = arith.constant 0 : index
      %254 = vector.load %arg24[%c0_127, %c0_128] : memref<16x32xbf16, #tpu.memory_space<vmem>>, vector<16x32xbf16>
      tpu.vector_store %arg24[%c0_127, %c0_128], %253 {strides = array<i32>} : memref<16x32xbf16, #tpu.memory_space<vmem>>, vector<16x32xbf16>,
      %cst_129 = arith.constant 0.000000e+00 : f32
      %255 = vector.broadcast %cst_129 : f32 to vector<16x32xf32>
      %c0_130 = arith.constant 0 : index
      %c0_131 = arith.constant 0 : index
      %256 = vector.load %arg25[%c0_130, %c0_131] : memref<16x32xf32, #tpu.memory_space<vmem>>, vector<16x32xf32>
      tpu.vector_store %arg25[%c0_130, %c0_131], %255 {strides = array<i32>} : memref<16x32xf32, #tpu.memory_space<vmem>>, vector<16x32xf32>,
    } else {
    }
    %c0 = arith.constant 0 : index
    %c0_1 = arith.constant 0 : index
    %3 = vector.load %arg24[%c0, %c0_1] : memref<16x32xbf16, #tpu.memory_space<vmem>>, vector<16x32xbf16>
    %c0_2 = arith.constant 0 : index
    %c0_3 = arith.constant 0 : index
    %4 = vector.load %arg18[%c0_2, %c0_3] : memref<32x128xbf16, #tpu.memory_space<vmem>>, vector<32x128xbf16>
    %cst = arith.constant dense<0.000000e+00> : vector<16x128xf32>
    %5 = tpu.matmul %3, %4, %cst {dimension_numbers = #tpu.dot_dimension_numbers<[1], [0], [0], [1], [0, 0, 1, 1], [], []>} : vector<16x32xbf16>, vector<32x128xbf16>, vector<16x128xf32> -> vector<16x128xf32>
    %c0_4 = arith.constant 0 : index
    %c0_5 = arith.constant 0 : index
    %6 = vector.load %arg19[%c0_4, %c0_5] : memref<1x128xf32, #tpu.memory_space<vmem>>, vector<1x128xf32>
    %7 = vector.broadcast %6 : vector<1x128xf32> to vector<16x128xf32>
    %8 = arith.addf %5, %7 : vector<16x128xf32>
    %cst_6 = arith.constant 5.000000e-01 : f32
    %9 = vector.broadcast %cst_6 : f32 to vector<16x128xf32>
    %10 = arith.mulf %9, %8 : vector<16x128xf32>
    %cst_7 = arith.constant 0.707106769 : f32
    %11 = vector.broadcast %cst_7 : f32 to vector<16x128xf32>
    %12 = arith.mulf %8, %11 : vector<16x128xf32>
    %cst_8 = arith.constant 0.000000e+00 : f32
    %13 = vector.broadcast %cst_8 : f32 to vector<16x128xf32>
    %14 = arith.cmpf oge, %12, %13 : vector<16x128xf32>
    %cst_9 = arith.constant 1.000000e+00 : f32
    %cst_10 = arith.constant -1.000000e+00 : f32
    %15 = vector.broadcast %cst_9 : f32 to vector<16x128xf32>
    %16 = vector.broadcast %cst_10 : f32 to vector<16x128xf32>
    %17 = arith.select %14, %15, %16 : vector<16x128xi1>, vector<16x128xf32>
    %18 = math.absf %12 : vector<16x128xf32>
    %cst_11 = arith.constant 0.327591091 : f32
    %19 = vector.broadcast %cst_11 : f32 to vector<16x128xf32>
    %20 = arith.mulf %19, %18 : vector<16x128xf32>
    %cst_12 = arith.constant 1.000000e+00 : f32
    %21 = vector.broadcast %cst_12 : f32 to vector<16x128xf32>
    %22 = arith.addf %21, %20 : vector<16x128xf32>
    %cst_13 = arith.constant 1.000000e+00 : f32
    %23 = vector.broadcast %cst_13 : f32 to vector<16x128xf32>
    %24 = arith.divf %23, %22 : vector<16x128xf32>
    %cst_14 = arith.constant 1.06140542 : f32
    %25 = vector.broadcast %cst_14 : f32 to vector<16x128xf32>
    %26 = arith.mulf %25, %24 : vector<16x128xf32>
    %cst_15 = arith.constant -1.45315206 : f32
    %27 = vector.broadcast %cst_15 : f32 to vector<16x128xf32>
    %28 = arith.addf %26, %27 : vector<16x128xf32>
    %29 = arith.mulf %28, %24 : vector<16x128xf32>
    %cst_16 = arith.constant 1.42141378 : f32
    %30 = vector.broadcast %cst_16 : f32 to vector<16x128xf32>
    %31 = arith.addf %29, %30 : vector<16x128xf32>
    %32 = arith.mulf %31, %24 : vector<16x128xf32>
    %cst_17 = arith.constant -0.284496725 : f32
    %33 = vector.broadcast %cst_17 : f32 to vector<16x128xf32>
    %34 = arith.addf %32, %33 : vector<16x128xf32>
    %35 = arith.mulf %34, %24 : vector<16x128xf32>
    %cst_18 = arith.constant 0.254829586 : f32
    %36 = vector.broadcast %cst_18 : f32 to vector<16x128xf32>
    %37 = arith.addf %35, %36 : vector<16x128xf32>
    %38 = arith.mulf %37, %24 : vector<16x128xf32>
    %cst_19 = arith.constant 0.000000e+00 : f32
    %39 = vector.broadcast %cst_19 : f32 to vector<16x128xf32>
    %40 = arith.subf %39, %18 : vector<16x128xf32>
    %41 = arith.mulf %40, %18 : vector<16x128xf32>
    %42 = math.exp %41 : vector<16x128xf32>
    %43 = arith.mulf %38, %42 : vector<16x128xf32>
    %cst_20 = arith.constant 1.000000e+00 : f32
    %44 = vector.broadcast %cst_20 : f32 to vector<16x128xf32>
    %45 = arith.subf %44, %43 : vector<16x128xf32>
    %46 = arith.mulf %17, %45 : vector<16x128xf32>
    %cst_21 = arith.constant 1.000000e+00 : f32
    %47 = vector.broadcast %cst_21 : f32 to vector<16x128xf32>
    %48 = arith.addf %47, %46 : vector<16x128xf32>
    %49 = arith.mulf %10, %48 : vector<16x128xf32>
    %c0_22 = arith.constant 0 : index
    %c0_23 = arith.constant 0 : index
    %50 = vector.load %arg25[%c0_22, %c0_23] : memref<16x32xf32, #tpu.memory_space<vmem>>, vector<16x32xf32>
    %51 = arith.truncf %49 : vector<16x128xf32> to vector<16x128xbf16>
    %c0_24 = arith.constant 0 : index
    %c0_25 = arith.constant 0 : index
    %52 = vector.load %arg20[%c0_24, %c0_25] : memref<128x32xbf16, #tpu.memory_space<vmem>>, vector<128x32xbf16>
    %cst_26 = arith.constant dense<0.000000e+00> : vector<16x32xf32>
    %53 = tpu.matmul %51, %52, %cst_26 {dimension_numbers = #tpu.dot_dimension_numbers<[1], [0], [0], [1], [0, 0, 1, 1], [], []>} : vector<16x128xbf16>, vector<128x32xbf16>, vector<16x32xf32> -> vector<16x32xf32>
    %54 = arith.addf %50, %53 : vector<16x32xf32>
    %c0_27 = arith.constant 0 : index
    %c0_28 = arith.constant 0 : index
    %55 = vector.load %arg25[%c0_27, %c0_28] : memref<16x32xf32, #tpu.memory_space<vmem>>, vector<16x32xf32>
    tpu.vector_store %arg25[%c0_27, %c0_28], %54 {strides = array<i32>} : memref<16x32xf32, #tpu.memory_space<vmem>>, vector<16x32xf32>,
    %c0_i32_29 = arith.constant 0 : i32
    %56 = arith.cmpi eq, %arg1, %c0_i32_29 : i32
    %57 = arith.extui %56 : i1 to i32
    %c0_i32_30 = arith.constant 0 : i32
    %58 = arith.cmpi ne, %57, %c0_i32_30 : i32
    scf.if %58 {
      %c0_31 = arith.constant 0 : index
      %c0_32 = arith.constant 0 : index
      %59 = vector.load %arg25[%c0_31, %c0_32] : memref<16x32xf32, #tpu.memory_space<vmem>>, vector<16x32xf32>
      %c0_33 = arith.constant 0 : index
      %c0_34 = arith.constant 0 : index
      %60 = vector.load %arg21[%c0_33, %c0_34] : memref<1x32xf32, #tpu.memory_space<vmem>>, vector<1x32xf32>
      %61 = vector.broadcast %60 : vector<1x32xf32> to vector<16x32xf32>
      %62 = arith.addf %59, %61 : vector<16x32xf32>
      %c0_35 = arith.constant 0 : index
      %c0_36 = arith.constant 0 : index
      %63 = vector.load %arg23[%c0_35, %c0_36] : memref<16x32xf32, #tpu.memory_space<vmem>>, vector<16x32xf32>
      %64 = arith.addf %62, %63 : vector<16x32xf32>
      %65 = vector.shape_cast %64 : vector<16x32xf32> to vector<1x16x32xf32>
      %c0_37 = arith.constant 0 : index
      %c0_38 = arith.constant 0 : index
      %c0_39 = arith.constant 0 : index
      %66 = vector.load %arg22[%c0_37, %c0_38, %c0_39] : memref<1x16x32xf32, #tpu.memory_space<vmem>>, vector<1x16x32xf32>
      tpu.vector_store %arg22[%c0_37, %c0_38, %c0_39], %65 {strides = array<i32>} : memref<1x16x32xf32, #tpu.memory_space<vmem>>, vector<1x16x32xf32>,
    } else {
    }
    return
  }
  func.func @transform_0(%arg0: i32, %arg1: i32) -> (i32, i32, i32) {
    %c0_i32 = arith.constant 0 : i32
    %c0_i32_0 = arith.constant 0 : i32
    %c0_i32_1 = arith.constant 0 : i32
    return %arg0, %c0_i32, %c0_i32_0 : i32, i32, i32
  }
  func.func @transform_1(%arg0: i32, %arg1: i32) -> (i32, i32, i32) {
    %c0_i32 = arith.constant 0 : i32
    %c0_i32_0 = arith.constant 0 : i32
    %c0_i32_1 = arith.constant 0 : i32
    return %arg0, %c0_i32, %c0_i32_0 : i32, i32, i32
  }
  func.func @transform_2(%arg0: i32, %arg1: i32) -> (i32, i32) {
    %c0_i32 = arith.constant 0 : i32
    %c0_i32_0 = arith.constant 0 : i32
    %c0_i32_1 = arith.constant 0 : i32
    return %c0_i32, %c0_i32_0 : i32, i32
  }
  func.func @transform_3(%arg0: i32, %arg1: i32) -> (i32, i32) {
    %c0_i32 = arith.constant 0 : i32
    %c0_i32_0 = arith.constant 0 : i32
    %c0_i32_1 = arith.constant 0 : i32
    return %c0_i32, %c0_i32_0 : i32, i32
  }
  func.func @transform_4(%arg0: i32, %arg1: i32) -> (i32, i32) {
    %c0_i32 = arith.constant 0 : i32
    %c0_i32_0 = arith.constant 0 : i32
    %c0_i32_1 = arith.constant 0 : i32
    return %c0_i32, %c0_i32_0 : i32, i32
  }
  func.func @transform_5(%arg0: i32, %arg1: i32) -> (i32, i32) {
    %c0_i32 = arith.constant 0 : i32
    %c0_i32_0 = arith.constant 0 : i32
    %c0_i32_1 = arith.constant 0 : i32
    return %c0_i32, %c0_i32_0 : i32, i32
  }
  func.func @transform_6(%arg0: i32, %arg1: i32) -> (i32, i32) {
    %c0_i32 = arith.constant 0 : i32
    %c0_i32_0 = arith.constant 0 : i32
    %c0_i32_1 = arith.constant 0 : i32
    return %c0_i32, %c0_i32_0 : i32, i32
  }
  func.func @transform_7(%arg0: i32, %arg1: i32) -> (i32, i32) {
    %c0_i32 = arith.constant 0 : i32
    %c0_i32_0 = arith.constant 0 : i32
    %c0_i32_1 = arith.constant 0 : i32
    return %c0_i32, %c0_i32_0 : i32, i32
  }
  func.func @transform_8(%arg0: i32, %arg1: i32) -> (i32, i32) {
    %c0_i32 = arith.constant 0 : i32
    %c0_i32_0 = arith.constant 0 : i32
    %c0_i32_1 = arith.constant 0 : i32
    return %c0_i32, %c0_i32_0 : i32, i32
  }
  func.func @transform_9(%arg0: i32, %arg1: i32) -> (i32, i32) {
    %c0_i32 = arith.constant 0 : i32
    %c0_i32_0 = arith.constant 0 : i32
    %c0_i32_1 = arith.constant 0 : i32
    return %c0_i32, %c0_i32_0 : i32, i32
  }
  func.func @transform_10(%arg0: i32, %arg1: i32) -> (i32, i32) {
    %c0_i32 = arith.constant 0 : i32
    %c0_i32_0 = arith.constant 0 : i32
    %c0_i32_1 = arith.constant 0 : i32
    return %c0_i32, %c0_i32_0 : i32, i32
  }
  func.func @transform_11(%arg0: i32, %arg1: i32) -> (i32, i32) {
    %c0_i32 = arith.constant 0 : i32
    %c0_i32_0 = arith.constant 0 : i32
    %c0_i32_1 = arith.constant 0 : i32
    return %c0_i32, %c0_i32_0 : i32, i32
  }
  func.func @transform_12(%arg0: i32, %arg1: i32) -> (i32, i32) {
    %c0_i32 = arith.constant 0 : i32
    %c0_i32_0 = arith.constant 0 : i32
    %c0_i32_1 = arith.constant 0 : i32
    return %c0_i32, %c0_i32_0 : i32, i32
  }
  func.func @transform_13(%arg0: i32, %arg1: i32) -> (i32, i32) {
    %c0_i32 = arith.constant 0 : i32
    %c0_i32_0 = arith.constant 0 : i32
    %c0_i32_1 = arith.constant 0 : i32
    return %c0_i32, %c0_i32_0 : i32, i32
  }
  func.func @transform_14(%arg0: i32, %arg1: i32) -> (i32, i32) {
    %c0_i32 = arith.constant 0 : i32
    %c0_i32_0 = arith.constant 0 : i32
    %c0_i32_1 = arith.constant 0 : i32
    return %c0_i32, %c0_i32_0 : i32, i32
  }
  func.func @transform_15(%arg0: i32, %arg1: i32) -> (i32, i32) {
    %c0_i32 = arith.constant 0 : i32
    %c0_i32_0 = arith.constant 0 : i32
    %c0_i32_1 = arith.constant 0 : i32
    return %c0_i32, %c0_i32_0 : i32, i32
  }
  func.func @transform_16(%arg0: i32, %arg1: i32) -> (i32, i32) {
    %c0_i32 = arith.constant 0 : i32
    %c0_i32_0 = arith.constant 0 : i32
    return %c0_i32, %arg1 : i32, i32
  }
  func.func @transform_17(%arg0: i32, %arg1: i32) -> (i32, i32) {
    %c0_i32 = arith.constant 0 : i32
    %c0_i32_0 = arith.constant 0 : i32
    return %c0_i32, %arg1 : i32, i32
  }
  func.func @transform_18(%arg0: i32, %arg1: i32) -> (i32, i32) {
    %c0_i32 = arith.constant 0 : i32
    %c0_i32_0 = arith.constant 0 : i32
    return %arg1, %c0_i32 : i32, i32
  }
  func.func @transform_19(%arg0: i32, %arg1: i32) -> (i32, i32) {
    %c0_i32 = arith.constant 0 : i32
    %c0_i32_0 = arith.constant 0 : i32
    %c0_i32_1 = arith.constant 0 : i32
    return %c0_i32, %c0_i32_0 : i32, i32
  }
  func.func @transform_20(%arg0: i32, %arg1: i32) -> (i32, i32, i32) {
    %c0_i32 = arith.constant 0 : i32
    %c0_i32_0 = arith.constant 0 : i32
    %c0_i32_1 = arith.constant 0 : i32
    return %arg0, %c0_i32, %c0_i32_0 : i32, i32, i32
  }
}

</mosaic_0001>

<llo_original>
// kernel: cross_attention_layer.1
$region0: #{cross_attention_layer.1}
  #allocation0 [shape = 'u32[]', space=smem, size = 0x4, offset = 0x4, fixed_abs, tag = 'smem constant byte address 0x4 - core index']
  #allocation1 [shape = 'u32[72,128]{1,0:T(1,128)}', space=vmem, size = 0x9000, scoped, tag = 'internal scratch']
  #allocation2 [shape = 'f32[16,32]{1,0:T(8,128)}', space=vmem, size = 0x2000, scoped, tag = 'scratch operand']
  #allocation3 [shape = 'bf16[16,32]{1,0:T(8,128)(2,1)}', space=vmem, size = 0x1000, scoped, tag = 'scratch operand']
  #allocation4 [shape = 'f32[16,32]{1,0:T(8,128)}', space=vmem, size = 0x2000, scoped, tag = 'scratch operand']
  %s0 = inlined_call_operand.vmem [shape: f32[2,16,32], index: 0, kind: input, shape index: {}]
  %s1 = inlined_call_operand.vmem [shape: f32[2,8,32], index: 1, kind: input, shape index: {}]
  %s2 = inlined_call_operand.vmem [shape: bf16[32,32], index: 2, kind: input, shape index: {}]
  %s3 = inlined_call_operand.vmem [shape: f32[1,32], index: 3, kind: input, shape index: {}]
  %s4 = inlined_call_operand.vmem [shape: bf16[32,32], index: 4, kind: input, shape index: {}]
  %s5 = inlined_call_operand.hbm [shape: f32[1,32], index: 5, kind: input, shape index: {}]
  %s6 = inlined_call_operand.vmem [shape: bf16[32,32], index: 6, kind: input, shape index: {}]
  %s7 = inlined_call_operand.hbm [shape: f32[1,32], index: 7, kind: input, shape index: {}]
  %s8 = inlined_call_operand.hbm [shape: bf16[32,32], index: 8, kind: input, shape index: {}]
  %s9 = inlined_call_operand.hbm [shape: f32[1,32], index: 9, kind: input, shape index: {}]
  %s10 = inlined_call_operand.hbm [shape: f32[1,32], index: 10, kind: input, shape index: {}]
  %s11 = inlined_call_operand.hbm [shape: f32[1,32], index: 11, kind: input, shape index: {}]
  %s12 = inlined_call_operand.hbm [shape: f32[1,32], index: 12, kind: input, shape index: {}]
  %s13 = inlined_call_operand.hbm [shape: f32[1,32], index: 13, kind: input, shape index: {}]
  %s14 = inlined_call_operand.hbm [shape: f32[1,32], index: 14, kind: input, shape index: {}]
  %s15 = inlined_call_operand.hbm [shape: f32[1,32], index: 15, kind: input, shape index: {}]
  %s16 = inlined_call_operand.hbm [shape: bf16[32,128], index: 16, kind: input, shape index: {}]
  %s17 = inlined_call_operand.hbm [shape: f32[1,128], index: 17, kind: input, shape index: {}]
  %s18 = inlined_call_operand.vmem [shape: bf16[128,32], index: 18, kind: input, shape index: {}]
  %s19 = inlined_call_operand.hbm [shape: f32[1,32], index: 19, kind: input, shape index: {}]
  %s20 = inlined_call_operand.hbm [shape: f32[2,16,32], index: 20, kind: output, shape index: {}]
  %s21 = sld [smem:[#allocation0]]
  $region173: #{cross_attention_layer.1} parent=0
    _
  %s23 = ssub.s32 1, %s21
  %s24 = scalar_select 0, %s23, %s21
  $region1: #{cross_attention_layer.1} parent=0
    #allocation5 [shape = 'u8[512]{0}', space=vmem, size = 0x400, scoped, tag = 'input window, operand 5, single buffered']
    #allocation6 [shape = 's32[2]{0}', space=sflag, size = 0x8, scoped, tag = 'scoped memory for cross_attention_layer.1']
    #allocation7 [shape = 's32[2]{0}', space=sflag, size = 0x8, scoped, tag = 'scoped memory for cross_attention_layer.1']
    #allocation8 [shape = 'u8[512]{0}', space=vmem, size = 0x400, scoped, tag = 'input window, operand 7, single buffered']
    #allocation9 [shape = 's32[1]{0}', space=sflag, size = 0x4, scoped, tag = 'scoped memory for cross_attention_layer.1']
    #allocation10 [shape = 'u8[8192]{0}', space=vmem, size = 0x2000, scoped, tag = 'input window, operand 8, single buffered']
    #allocation11 [shape = 'u8[512]{0}', space=vmem, size = 0x400, scoped, tag = 'input window, operand 9, single buffered']
    #allocation12 [shape = 's32[1]{0}', space=sflag, size = 0x4, scoped, tag = 'scoped memory for cross_attention_layer.1']
    #allocation13 [shape = 'u8[512]{0}', space=vmem, size = 0x400, scoped, tag = 'input window, operand 10, single buffered']
    #allocation14 [shape = 'u8[512]{0}', space=vmem, size = 0x400, scoped, tag = 'input window, operand 11, single buffered']
    #allocation15 [shape = 's32[1]{0}', space=sflag, size = 0x4, scoped, tag = 'scoped memory for cross_attention_layer.1']
    #allocation16 [shape = 'u8[512]{0}', space=vmem, size = 0x400, scoped, tag = 'input window, operand 12, single buffered']
    #allocation17 [shape = 'u8[512]{0}', space=vmem, size = 0x400, scoped, tag = 'input window, operand 13, single buffered']
    #allocation18 [shape = 's32[1]{0}', space=sflag, size = 0x4, scoped, tag = 'scoped memory for cross_attention_layer.1']
    #allocation19 [shape = 'u8[512]{0}', space=vmem, size = 0x400, scoped, tag = 'input window, operand 14, single buffered']
    #allocation20 [shape = 'u8[512]{0}', space=vmem, size = 0x400, scoped, tag = 'input window, operand 15, single buffered']
    #allocation21 [shape = 's32[1]{0}', space=sflag, size = 0x4, scoped, tag = 'scoped memory for cross_attention_layer.1']
    #allocation22 [shape = 'u8[8192]{0}', space=vmem, size = 0x2000, scoped, tag = 'input window, operand 16, single buffered']
    #allocation23 [shape = 'u8[512]{0}', space=vmem, size = 0x400, scoped, tag = 'input window, operand 17, single buffered']
    #allocation24 [shape = 's32[1]{0}', space=sflag, size = 0x4, scoped, tag = 'scoped memory for cross_attention_layer.1']
    #allocation25 [shape = 'u8[512]{0}', space=vmem, size = 0x400, scoped, tag = 'input window, operand 19, single buffered']
    #allocation26 [shape = 'u8[16384]{0}', space=vmem, size = 0x4000, scoped, tag = 'output window, operand 0']
    %25 = vsyncpa [#allocation6], 0
    %26 = vsyncpa [#allocation9], 0
    %27 = vsyncpa [#allocation12], 0
    %28 = vsyncpa [#allocation15], 0
    %29 = vsyncpa [#allocation18], 0
    %30 = vsyncpa [#allocation21], 0
    %31 = vsyncpa [#allocation24], 0
    %32 = vsyncpa [#allocation7], 0
    %s33 = scalar_lea.sflag [#allocation7], 1
    %34 = vsyncpa %s33, 0
    loop: start=0, step=1, limit=4
    $region2: #{cross_attention_layer.1} parent=1 // loop_pre_header
      _
    $region3: #{cross_attention_layer.1} parent=1 // loop_header
      %s36 = sphi 0, %s40
      %p37 = scmp.ge.s32.totalorder %s36, 4
      %s43 = sphi 0, %s55
      %s44 = sphi 0, %s51
      %s45 = sphi 0, %s43
      %s46 = sphi 0, %s44
      %s47 = sphi 0, %s45
      %s48 = sphi 0, %s46
      %s58 = sphi 0, %s60
      %s61 = sphi 0, %s58
      %s62 = sphi 0, %s61
      %s78 = sphi 0, %s62
      %s84 = sphi 0, %s86
      %s87 = sphi 0, %s84
      %s88 = sphi 0, %s87
      %s104 = sphi 0, %s88
      %s108 = sphi 0, %s108
      %s110 = sphi 0, %s108
      %s111 = sphi 0, %s110
      %s125 = sphi 0, %s111
      %s129 = sphi 0, %s129
      %s131 = sphi 0, %s129
      %s132 = sphi 0, %s131
      %s146 = sphi 0, %s132
      %s150 = sphi 0, %s150
      %s152 = sphi 0, %s150
      %s153 = sphi 0, %s152
      %s167 = sphi 0, %s153
      %s171 = sphi 0, %s171
      %s173 = sphi 0, %s171
      %s174 = sphi 0, %s173
      %s188 = sphi 0, %s174
      %s192 = sphi 0, %s192
      %s194 = sphi 0, %s192
      %s195 = sphi 0, %s194
      %s209 = sphi 0, %s195
      %s213 = sphi 0, %s213
      %s215 = sphi 0, %s213
      %s216 = sphi 0, %s215
      %s230 = sphi 0, %s216
      %s234 = sphi 0, %s234
      %s236 = sphi 0, %s234
      %s237 = sphi 0, %s236
      %s251 = sphi 0, %s237
      %s255 = sphi 0, %s255
      %s257 = sphi 0, %s255
      %s258 = sphi 0, %s257
      %s272 = sphi 0, %s258
      %s276 = sphi 0, %s276
      %s278 = sphi 0, %s276
      %s279 = sphi 0, %s278
      %s293 = sphi 0, %s279
      %s297 = sphi 0, %s297
      %s299 = sphi 0, %s297
      %s300 = sphi 0, %s299
      %s314 = sphi 0, %s300
      %s318 = sphi 0, %s318
      %s320 = sphi 0, %s318
      %s321 = sphi 0, %s320
      %s335 = sphi 0, %s321
      %s339 = sphi 0, %s339
      %s341 = sphi 0, %s339
      %s342 = sphi 0, %s341
      %s356 = sphi 0, %s342
      %s360 = sphi 0, %s360
      %s362 = sphi 0, %s360
      %s363 = sphi 0, %s362
      %s377 = sphi 0, %s363
      %s381 = sphi 0, %s381
      %s383 = sphi 0, %s381
      %s384 = sphi 0, %s383
      %s398 = sphi 0, %s384
      %s404 = sphi 0, %s406
      %s407 = sphi 0, %s404
      %s408 = sphi 0, %s407
      %s424 = sphi 0, %s408
      %s430 = sphi 0, %s432
      %s433 = sphi 0, %s430
      %s434 = sphi 0, %s433
      %s450 = sphi 0, %s434
      %s456 = sphi 0, %s458
      %s459 = sphi 0, %s456
      %s460 = sphi 0, %s459
      %s476 = sphi 0, %s460
      %s480 = sphi 0, %s480
      %s482 = sphi 0, %s480
      %s483 = sphi 0, %s482
      %s497 = sphi 0, %s483
      %s503 = sphi 0, %s505
      %s506 = sphi 0, %s503
      %s507 = sphi 0, %s506
      %s523 = sphi 0, %s507
    $region4: #{cross_attention_layer.1} parent=1 // loop_header_branch
      %39 = sbr.rel (%p37) target = $region8
    $region5: #{cross_attention_layer.1} parent=1 // loop_body
      %s41 = ssub.s32 %s36, 1
      %s42 = ssub.s32 %s36, 2
      %s49 = sadd.s32 1, %s44
      %p50 = scmp.ge.s32.totalorder %s49, 1
      %s51 = scalar_select %p50, 0, %s49
      %s52 = sadd.s32 1, %s43
      %s53 = scalar_select %p50, %s52, %s43
      %p54 = scmp.ge.s32.totalorder %s53, 2
      %s55 = scalar_select %p54, 0, %s53
      %s56 = ssub.s32 %s43, %s55
      %p57 = scmp.eq.s32.totalorder %s56, 0
      %s59 = sadd.s32 %s58, 1
      %s60 = scalar_select %p57, %s58, %s59
      %p63 = pneg %p57
      %p64 = scmp.eq.s32.totalorder %s36, 1
      %p65 = por %p63, %p64
      %p66 = scmp.ne.s32.totalorder %s58, %s61
      %p67 = scmp.eq.s32.totalorder %s36, 0
      %p68 = por %p66, %p67
      %p69 = scmp.ne.s32.totalorder %s58, %s61
      %p70 = scmp.eq.s32.totalorder %s41, 1
      %p71 = por %p69, %p70
      %p72 = scmp.ne.s32.totalorder %s61, %s62
      %p73 = scmp.eq.s32.totalorder %s41, 0
      %p74 = por %p72, %p73
      %p75 = scmp.ne.s32.totalorder %s61, %s62
      %p76 = scmp.eq.s32.totalorder %s42, 1
      %p77 = por %p75, %p76
      %p79 = scmp.ne.s32.totalorder %s62, %s78
      %p80 = scmp.eq.s32.totalorder %s42, 0
      %p81 = por %p79, %p80
      %s82 = ssub.s32 %s43, %s55
      %p83 = scmp.eq.s32.totalorder %s82, 0
      %s85 = sadd.s32 %s84, 1
      %s86 = scalar_select %p83, %s84, %s85
      %p89 = pneg %p83
      %p90 = scmp.eq.s32.totalorder %s36, 1
      %p91 = por %p89, %p90
      %p92 = scmp.ne.s32.totalorder %s84, %s87
      %p93 = scmp.eq.s32.totalorder %s36, 0
      %p94 = por %p92, %p93
      %p95 = scmp.ne.s32.totalorder %s84, %s87
      %p96 = scmp.eq.s32.totalorder %s41, 1
      %p97 = por %p95, %p96
      %p98 = scmp.ne.s32.totalorder %s87, %s88
      %p99 = scmp.eq.s32.totalorder %s41, 0
      %p100 = por %p98, %p99
      %p101 = scmp.ne.s32.totalorder %s87, %s88
      %p102 = scmp.eq.s32.totalorder %s42, 1
      %p103 = por %p101, %p102
      %p105 = scmp.ne.s32.totalorder %s88, %s104
      %p106 = scmp.eq.s32.totalorder %s42, 0
      %p107 = por %p105, %p106
      %s109 = sadd.s32 %s108, 1
      %p112 = scmp.eq.s32.totalorder %s36, 1
      %p113 = scmp.ne.s32.totalorder %s108, %s110
      %p114 = scmp.eq.s32.totalorder %s36, 0
      %p115 = por %p113, %p114
      %p116 = scmp.ne.s32.totalorder %s108, %s110
      %p117 = scmp.eq.s32.totalorder %s41, 1
      %p118 = por %p116, %p117
      %p119 = scmp.ne.s32.totalorder %s110, %s111
      %p120 = scmp.eq.s32.totalorder %s41, 0
      %p121 = por %p119, %p120
      %p122 = scmp.ne.s32.totalorder %s110, %s111
      %p123 = scmp.eq.s32.totalorder %s42, 1
      %p124 = por %p122, %p123
      %p126 = scmp.ne.s32.totalorder %s111, %s125
      %p127 = scmp.eq.s32.totalorder %s42, 0
      %p128 = por %p126, %p127
      %s130 = sadd.s32 %s129, 1
      %p133 = scmp.eq.s32.totalorder %s36, 1
      %p134 = scmp.ne.s32.totalorder %s129, %s131
      %p135 = scmp.eq.s32.totalorder %s36, 0
      %p136 = por %p134, %p135
      %p137 = scmp.ne.s32.totalorder %s129, %s131
      %p138 = scmp.eq.s32.totalorder %s41, 1
      %p139 = por %p137, %p138
      %p140 = scmp.ne.s32.totalorder %s131, %s132
      %p141 = scmp.eq.s32.totalorder %s41, 0
      %p142 = por %p140, %p141
      %p143 = scmp.ne.s32.totalorder %s131, %s132
      %p144 = scmp.eq.s32.totalorder %s42, 1
      %p145 = por %p143, %p144
      %p147 = scmp.ne.s32.totalorder %s132, %s146
      %p148 = scmp.eq.s32.totalorder %s42, 0
      %p149 = por %p147, %p148
      %s151 = sadd.s32 %s150, 1
      %p154 = scmp.eq.s32.totalorder %s36, 1
      %p155 = scmp.ne.s32.totalorder %s150, %s152
      %p156 = scmp.eq.s32.totalorder %s36, 0
      %p157 = por %p155, %p156
      %p158 = scmp.ne.s32.totalorder %s150, %s152
      %p159 = scmp.eq.s32.totalorder %s41, 1
      %p160 = por %p158, %p159
      %p161 = scmp.ne.s32.totalorder %s152, %s153
      %p162 = scmp.eq.s32.totalorder %s41, 0
      %p163 = por %p161, %p162
      %p164 = scmp.ne.s32.totalorder %s152, %s153
      %p165 = scmp.eq.s32.totalorder %s42, 1
      %p166 = por %p164, %p165
      %p168 = scmp.ne.s32.totalorder %s153, %s167
      %p169 = scmp.eq.s32.totalorder %s42, 0
      %p170 = por %p168, %p169
      %s172 = sadd.s32 %s171, 1
      %p175 = scmp.eq.s32.totalorder %s36, 1
      %p176 = scmp.ne.s32.totalorder %s171, %s173
      %p177 = scmp.eq.s32.totalorder %s36, 0
      %p178 = por %p176, %p177
      %p179 = scmp.ne.s32.totalorder %s171, %s173
      %p180 = scmp.eq.s32.totalorder %s41, 1
      %p181 = por %p179, %p180
      %p182 = scmp.ne.s32.totalorder %s173, %s174
      %p183 = scmp.eq.s32.totalorder %s41, 0
      %p184 = por %p182, %p183
      %p185 = scmp.ne.s32.totalorder %s173, %s174
      %p186 = scmp.eq.s32.totalorder %s42, 1
      %p187 = por %p185, %p186
      %p189 = scmp.ne.s32.totalorder %s174, %s188
      %p190 = scmp.eq.s32.totalorder %s42, 0
      %p191 = por %p189, %p190
      %s193 = sadd.s32 %s192, 1
      %p196 = scmp.eq.s32.totalorder %s36, 1
      %p197 = scmp.ne.s32.totalorder %s192, %s194
      %p198 = scmp.eq.s32.totalorder %s36, 0
      %p199 = por %p197, %p198
      %p200 = scmp.ne.s32.totalorder %s192, %s194
      %p201 = scmp.eq.s32.totalorder %s41, 1
      %p202 = por %p200, %p201
      %p203 = scmp.ne.s32.totalorder %s194, %s195
      %p204 = scmp.eq.s32.totalorder %s41, 0
      %p205 = por %p203, %p204
      %p206 = scmp.ne.s32.totalorder %s194, %s195
      %p207 = scmp.eq.s32.totalorder %s42, 1
      %p208 = por %p206, %p207
      %p210 = scmp.ne.s32.totalorder %s195, %s209
      %p211 = scmp.eq.s32.totalorder %s42, 0
      %p212 = por %p210, %p211
      %s214 = sadd.s32 %s213, 1
      %p217 = scmp.eq.s32.totalorder %s36, 1
      %p218 = scmp.ne.s32.totalorder %s213, %s215
      %p219 = scmp.eq.s32.totalorder %s36, 0
      %p220 = por %p218, %p219
      %p221 = scmp.ne.s32.totalorder %s213, %s215
      %p222 = scmp.eq.s32.totalorder %s41, 1
      %p223 = por %p221, %p222
      %p224 = scmp.ne.s32.totalorder %s215, %s216
      %p225 = scmp.eq.s32.totalorder %s41, 0
      %p226 = por %p224, %p225
      %p227 = scmp.ne.s32.totalorder %s215, %s216
      %p228 = scmp.eq.s32.totalorder %s42, 1
      %p229 = por %p227, %p228
      %p231 = scmp.ne.s32.totalorder %s216, %s230
      %p232 = scmp.eq.s32.totalorder %s42, 0
      %p233 = por %p231, %p232
      %s235 = sadd.s32 %s234, 1
      %p238 = scmp.eq.s32.totalorder %s36, 1
      %p239 = scmp.ne.s32.totalorder %s234, %s236
      %p240 = scmp.eq.s32.totalorder %s36, 0
      %p241 = por %p239, %p240
      %p242 = scmp.ne.s32.totalorder %s234, %s236
      %p243 = scmp.eq.s32.totalorder %s41, 1
      %p244 = por %p242, %p243
      %p245 = scmp.ne.s32.totalorder %s236, %s237
      %p246 = scmp.eq.s32.totalorder %s41, 0
      %p247 = por %p245, %p246
      %p248 = scmp.ne.s32.totalorder %s236, %s237
      %p249 = scmp.eq.s32.totalorder %s42, 1
      %p250 = por %p248, %p249
      %p252 = scmp.ne.s32.totalorder %s237, %s251
      %p253 = scmp.eq.s32.totalorder %s42, 0
      %p254 = por %p252, %p253
      %s256 = sadd.s32 %s255, 1
      %p259 = scmp.eq.s32.totalorder %s36, 1
      %p260 = scmp.ne.s32.totalorder %s255, %s257
      %p261 = scmp.eq.s32.totalorder %s36, 0
      %p262 = por %p260, %p261
      %p263 = scmp.ne.s32.totalorder %s255, %s257
      %p264 = scmp.eq.s32.totalorder %s41, 1
      %p265 = por %p263, %p264
      %p266 = scmp.ne.s32.totalorder %s257, %s258
      %p267 = scmp.eq.s32.totalorder %s41, 0
      %p268 = por %p266, %p267
      %p269 = scmp.ne.s32.totalorder %s257, %s258
      %p270 = scmp.eq.s32.totalorder %s42, 1
      %p271 = por %p269, %p270
      %p273 = scmp.ne.s32.totalorder %s258, %s272
      %p274 = scmp.eq.s32.totalorder %s42, 0
      %p275 = por %p273, %p274
      %s277 = sadd.s32 %s276, 1
      %p280 = scmp.eq.s32.totalorder %s36, 1
      %p281 = scmp.ne.s32.totalorder %s276, %s278
      %p282 = scmp.eq.s32.totalorder %s36, 0
      %p283 = por %p281, %p282
      %p284 = scmp.ne.s32.totalorder %s276, %s278
      %p285 = scmp.eq.s32.totalorder %s41, 1
      %p286 = por %p284, %p285
      %p287 = scmp.ne.s32.totalorder %s278, %s279
      %p288 = scmp.eq.s32.totalorder %s41, 0
      %p289 = por %p287, %p288
      %p290 = scmp.ne.s32.totalorder %s278, %s279
      %p291 = scmp.eq.s32.totalorder %s42, 1
      %p292 = por %p290, %p291
      %p294 = scmp.ne.s32.totalorder %s279, %s293
      %p295 = scmp.eq.s32.totalorder %s42, 0
      %p296 = por %p294, %p295
      %s298 = sadd.s32 %s297, 1
      %p301 = scmp.eq.s32.totalorder %s36, 1
      %p302 = scmp.ne.s32.totalorder %s297, %s299
      %p303 = scmp.eq.s32.totalorder %s36, 0
      %p304 = por %p302, %p303
      %p305 = scmp.ne.s32.totalorder %s297, %s299
      %p306 = scmp.eq.s32.totalorder %s41, 1
      %p307 = por %p305, %p306
      %p308 = scmp.ne.s32.totalorder %s299, %s300
      %p309 = scmp.eq.s32.totalorder %s41, 0
      %p310 = por %p308, %p309
      %p311 = scmp.ne.s32.totalorder %s299, %s300
      %p312 = scmp.eq.s32.totalorder %s42, 1
      %p313 = por %p311, %p312
      %p315 = scmp.ne.s32.totalorder %s300, %s314
      %p316 = scmp.eq.s32.totalorder %s42, 0
      %p317 = por %p315, %p316
      %s319 = sadd.s32 %s318, 1
      %p322 = scmp.eq.s32.totalorder %s36, 1
      %p323 = scmp.ne.s32.totalorder %s318, %s320
      %p324 = scmp.eq.s32.totalorder %s36, 0
      %p325 = por %p323, %p324
      %p326 = scmp.ne.s32.totalorder %s318, %s320
      %p327 = scmp.eq.s32.totalorder %s41, 1
      %p328 = por %p326, %p327
      %p329 = scmp.ne.s32.totalorder %s320, %s321
      %p330 = scmp.eq.s32.totalorder %s41, 0
      %p331 = por %p329, %p330
      %p332 = scmp.ne.s32.totalorder %s320, %s321
      %p333 = scmp.eq.s32.totalorder %s42, 1
      %p334 = por %p332, %p333
      %p336 = scmp.ne.s32.totalorder %s321, %s335
      %p337 = scmp.eq.s32.totalorder %s42, 0
      %p338 = por %p336, %p337
      %s340 = sadd.s32 %s339, 1
      %p343 = scmp.eq.s32.totalorder %s36, 1
      %p344 = scmp.ne.s32.totalorder %s339, %s341
      %p345 = scmp.eq.s32.totalorder %s36, 0
      %p346 = por %p344, %p345
      %p347 = scmp.ne.s32.totalorder %s339, %s341
      %p348 = scmp.eq.s32.totalorder %s41, 1
      %p349 = por %p347, %p348
      %p350 = scmp.ne.s32.totalorder %s341, %s342
      %p351 = scmp.eq.s32.totalorder %s41, 0
      %p352 = por %p350, %p351
      %p353 = scmp.ne.s32.totalorder %s341, %s342
      %p354 = scmp.eq.s32.totalorder %s42, 1
      %p355 = por %p353, %p354
      %p357 = scmp.ne.s32.totalorder %s342, %s356
      %p358 = scmp.eq.s32.totalorder %s42, 0
      %p359 = por %p357, %p358
      %s361 = sadd.s32 %s360, 1
      %p364 = scmp.eq.s32.totalorder %s36, 1
      %p365 = scmp.ne.s32.totalorder %s360, %s362
      %p366 = scmp.eq.s32.totalorder %s36, 0
      %p367 = por %p365, %p366
      %p368 = scmp.ne.s32.totalorder %s360, %s362
      %p369 = scmp.eq.s32.totalorder %s41, 1
      %p370 = por %p368, %p369
      %p371 = scmp.ne.s32.totalorder %s362, %s363
      %p372 = scmp.eq.s32.totalorder %s41, 0
      %p373 = por %p371, %p372
      %p374 = scmp.ne.s32.totalorder %s362, %s363
      %p375 = scmp.eq.s32.totalorder %s42, 1
      %p376 = por %p374, %p375
      %p378 = scmp.ne.s32.totalorder %s363, %s377
      %p379 = scmp.eq.s32.totalorder %s42, 0
      %p380 = por %p378, %p379
      %s382 = sadd.s32 %s381, 1
      %p385 = scmp.eq.s32.totalorder %s36, 1
      %p386 = scmp.ne.s32.totalorder %s381, %s383
      %p387 = scmp.eq.s32.totalorder %s36, 0
      %p388 = por %p386, %p387
      %p389 = scmp.ne.s32.totalorder %s381, %s383
      %p390 = scmp.eq.s32.totalorder %s41, 1
      %p391 = por %p389, %p390
      %p392 = scmp.ne.s32.totalorder %s383, %s384
      %p393 = scmp.eq.s32.totalorder %s41, 0
      %p394 = por %p392, %p393
      %p395 = scmp.ne.s32.totalorder %s383, %s384
      %p396 = scmp.eq.s32.totalorder %s42, 1
      %p397 = por %p395, %p396
      %p399 = scmp.ne.s32.totalorder %s384, %s398
      %p400 = scmp.eq.s32.totalorder %s42, 0
      %p401 = por %p399, %p400
      %s402 = ssub.s32 %s44, %s51
      %p403 = scmp.eq.s32.totalorder %s402, 0
      %s405 = sadd.s32 %s404, 1
      %s406 = scalar_select %p403, %s404, %s405
      %p409 = pneg %p403
      %p410 = scmp.eq.s32.totalorder %s36, 1
      %p411 = por %p409, %p410
      %p412 = scmp.ne.s32.totalorder %s404, %s407
      %p413 = scmp.eq.s32.totalorder %s36, 0
      %p414 = por %p412, %p413
      %p415 = scmp.ne.s32.totalorder %s404, %s407
      %p416 = scmp.eq.s32.totalorder %s41, 1
      %p417 = por %p415, %p416
      %p418 = scmp.ne.s32.totalorder %s407, %s408
      %p419 = scmp.eq.s32.totalorder %s41, 0
      %p420 = por %p418, %p419
      %p421 = scmp.ne.s32.totalorder %s407, %s408
      %p422 = scmp.eq.s32.totalorder %s42, 1
      %p423 = por %p421, %p422
      %p425 = scmp.ne.s32.totalorder %s408, %s424
      %p426 = scmp.eq.s32.totalorder %s42, 0
      %p427 = por %p425, %p426
      %s428 = ssub.s32 %s44, %s51
      %p429 = scmp.eq.s32.totalorder %s428, 0
      %s431 = sadd.s32 %s430, 1
      %s432 = scalar_select %p429, %s430, %s431
      %p435 = pneg %p429
      %p436 = scmp.eq.s32.totalorder %s36, 1
      %p437 = por %p435, %p436
      %p438 = scmp.ne.s32.totalorder %s430, %s433
      %p439 = scmp.eq.s32.totalorder %s36, 0
      %p440 = por %p438, %p439
      %p441 = scmp.ne.s32.totalorder %s430, %s433
      %p442 = scmp.eq.s32.totalorder %s41, 1
      %p443 = por %p441, %p442
      %p444 = scmp.ne.s32.totalorder %s433, %s434
      %p445 = scmp.eq.s32.totalorder %s41, 0
      %p446 = por %p444, %p445
      %p447 = scmp.ne.s32.totalorder %s433, %s434
      %p448 = scmp.eq.s32.totalorder %s42, 1
      %p449 = por %p447, %p448
      %p451 = scmp.ne.s32.totalorder %s434, %s450
      %p452 = scmp.eq.s32.totalorder %s42, 0
      %p453 = por %p451, %p452
      %s454 = ssub.s32 %s44, %s51
      %p455 = scmp.eq.s32.totalorder %s454, 0
      %s457 = sadd.s32 %s456, 1
      %s458 = scalar_select %p455, %s456, %s457
      %p461 = pneg %p455
      %p462 = scmp.eq.s32.totalorder %s36, 1
      %p463 = por %p461, %p462
      %p464 = scmp.ne.s32.totalorder %s456, %s459
      %p465 = scmp.eq.s32.totalorder %s36, 0
      %p466 = por %p464, %p465
      %p467 = scmp.ne.s32.totalorder %s456, %s459
      %p468 = scmp.eq.s32.totalorder %s41, 1
      %p469 = por %p467, %p468
      %p470 = scmp.ne.s32.totalorder %s459, %s460
      %p471 = scmp.eq.s32.totalorder %s41, 0
      %p472 = por %p470, %p471
      %p473 = scmp.ne.s32.totalorder %s459, %s460
      %p474 = scmp.eq.s32.totalorder %s42, 1
      %p475 = por %p473, %p474
      %p477 = scmp.ne.s32.totalorder %s460, %s476
      %p478 = scmp.eq.s32.totalorder %s42, 0
      %p479 = por %p477, %p478
      %s481 = sadd.s32 %s480, 1
      %p484 = scmp.eq.s32.totalorder %s36, 1
      %p485 = scmp.ne.s32.totalorder %s480, %s482
      %p486 = scmp.eq.s32.totalorder %s36, 0
      %p487 = por %p485, %p486
      %p488 = scmp.ne.s32.totalorder %s480, %s482
      %p489 = scmp.eq.s32.totalorder %s41, 1
      %p490 = por %p488, %p489
      %p491 = scmp.ne.s32.totalorder %s482, %s483
      %p492 = scmp.eq.s32.totalorder %s41, 0
      %p493 = por %p491, %p492
      %p494 = scmp.ne.s32.totalorder %s482, %s483
      %p495 = scmp.eq.s32.totalorder %s42, 1
      %p496 = por %p494, %p495
      %p498 = scmp.ne.s32.totalorder %s483, %s497
      %p499 = scmp.eq.s32.totalorder %s42, 0
      %p500 = por %p498, %p499
      %s501 = ssub.s32 %s43, %s55
      %p502 = scmp.eq.s32.totalorder %s501, 0
      %s504 = sadd.s32 %s503, 1
      %s505 = scalar_select %p502, %s503, %s504
      %p508 = pneg %p502
      %p509 = scmp.eq.s32.totalorder %s36, 1
      %p510 = por %p508, %p509
      %p511 = scmp.ne.s32.totalorder %s503, %s506
      %p512 = scmp.eq.s32.totalorder %s36, 0
      %p513 = por %p511, %p512
      %p514 = scmp.ne.s32.totalorder %s503, %s506
      %p515 = scmp.eq.s32.totalorder %s41, 1
      %p516 = por %p514, %p515
      %p517 = scmp.ne.s32.totalorder %s506, %s507
      %p518 = scmp.eq.s32.totalorder %s41, 0
      %p519 = por %p517, %p518
      %p520 = scmp.ne.s32.totalorder %s506, %s507
      %p521 = scmp.eq.s32.totalorder %s42, 1
      %p522 = por %p520, %p521
      %p524 = scmp.ne.s32.totalorder %s507, %s523
      %p525 = scmp.eq.s32.totalorder %s42, 0
      %p526 = por %p524, %p525
      %p527 = scmp.le.s32.totalorder 1, %s36
      %p528 = scmp.lt.s32.totalorder %s36, 3
      %p529 = pnand %p527, %p528
      %p530 = pneg %p529
      // Predicated region
      $region9: #{cross_attention_layer.1} parent=5 // pred_check
        _
      $region10: #{cross_attention_layer.1} parent=5 // pred_check_branch
        %532 = sbr.rel (%p529) target = $region12
      $region11: #{cross_attention_layer.1} parent=5 // pred_region
        %s533 = ssub.s32 %s36, 1
        // Predicated region
        $region13: #{cross_attention_layer.1} parent=11 // pred_check
          %p534 = pneg %p121
        $region14: #{cross_attention_layer.1} parent=11 // pred_check_branch
          %536 = sbr.rel (%p534) target = $region16
        $region15: #{cross_attention_layer.1} parent=11 // pred_region
          _
        $region16: #{cross_attention_layer.1} parent=11 // pred_fallthru
          _
        // Predicated region
        $region17: #{cross_attention_layer.1} parent=11 // pred_check
          %p537 = pneg %p142
        $region18: #{cross_attention_layer.1} parent=11 // pred_check_branch
          %539 = sbr.rel (%p537) target = $region20
        $region19: #{cross_attention_layer.1} parent=11 // pred_region
          _
        $region20: #{cross_attention_layer.1} parent=11 // pred_fallthru
          _
        // Predicated region
        $region21: #{cross_attention_layer.1} parent=11 // pred_check
          %p540 = pneg %p163
        $region22: #{cross_attention_layer.1} parent=11 // pred_check_branch
          %542 = sbr.rel (%p540) target = $region24
        $region23: #{cross_attention_layer.1} parent=11 // pred_region
          _
        $region24: #{cross_attention_layer.1} parent=11 // pred_fallthru
          _
        // Predicated region
        $region25: #{cross_attention_layer.1} parent=11 // pred_check
          %p543 = pneg %p184
        $region26: #{cross_attention_layer.1} parent=11 // pred_check_branch
          %545 = sbr.rel (%p543) target = $region28
        $region27: #{cross_attention_layer.1} parent=11 // pred_region
          %547 = vsyncadd [#allocation6], 0
          %s549 = sshll.u32 %s5, 4
          %s550 = int_to_ptr.hbm [resolvable:$true] %s549
          %s551 = sshll.u32 [#allocation5], 4
          %s552 = int_to_ptr.vmem [resolvable:$true] %s551
          %554 = dma.hbm_to_vmem [thread:$0]  %s550, 16, %s552, [#allocation6]
        $region28: #{cross_attention_layer.1} parent=11 // pred_fallthru
          _
        // Predicated region
        $region29: #{cross_attention_layer.1} parent=11 // pred_check
          %p555 = pneg %p205
        $region30: #{cross_attention_layer.1} parent=11 // pred_check_branch
          %557 = sbr.rel (%p555) target = $region32
        $region31: #{cross_attention_layer.1} parent=11 // pred_region
          _
        $region32: #{cross_attention_layer.1} parent=11 // pred_fallthru
          _
        // Predicated region
        $region33: #{cross_attention_layer.1} parent=11 // pred_check
          %p558 = pneg %p226
        $region34: #{cross_attention_layer.1} parent=11 // pred_check_branch
          %560 = sbr.rel (%p558) target = $region36
        $region35: #{cross_attention_layer.1} parent=11 // pred_region
          %562 = vsyncadd [#allocation9], 0
          %s564 = sshll.u32 %s7, 4
          %s565 = int_to_ptr.hbm [resolvable:$true] %s564
          %s566 = sshll.u32 [#allocation8], 4
          %s567 = int_to_ptr.vmem [resolvable:$true] %s566
          %569 = dma.hbm_to_vmem [thread:$0]  %s565, 16, %s567, [#allocation9]
        $region36: #{cross_attention_layer.1} parent=11 // pred_fallthru
          _
        // Predicated region
        $region37: #{cross_attention_layer.1} parent=11 // pred_check
          %p570 = pneg %p247
        $region38: #{cross_attention_layer.1} parent=11 // pred_check_branch
          %572 = sbr.rel (%p570) target = $region40
        $region39: #{cross_attention_layer.1} parent=11 // pred_region
          %574 = vsyncadd [#allocation9], 0
          %s575 = sshll.u32 %s8, 4
          %s576 = int_to_ptr.hbm [resolvable:$true] %s575
          %s577 = sshll.u32 [#allocation10], 4
          %s578 = int_to_ptr.vmem [resolvable:$true] %s577
          %583 = dma.hbm_to_vmem [thread:$0]  %s576, 256, %s578, [#allocation9], 64, 64, 4
        $region40: #{cross_attention_layer.1} parent=11 // pred_fallthru
          _
        // Predicated region
        $region41: #{cross_attention_layer.1} parent=11 // pred_check
          %p584 = pneg %p268
        $region42: #{cross_attention_layer.1} parent=11 // pred_check_branch
          %586 = sbr.rel (%p584) target = $region44
        $region43: #{cross_attention_layer.1} parent=11 // pred_region
          %588 = vsyncadd [#allocation12], 0
          %s590 = sshll.u32 %s9, 4
          %s591 = int_to_ptr.hbm [resolvable:$true] %s590
          %s592 = sshll.u32 [#allocation11], 4
          %s593 = int_to_ptr.vmem [resolvable:$true] %s592
          %595 = dma.hbm_to_vmem [thread:$0]  %s591, 16, %s593, [#allocation12]
        $region44: #{cross_attention_layer.1} parent=11 // pred_fallthru
          _
        // Predicated region
        $region45: #{cross_attention_layer.1} parent=11 // pred_check
          %p596 = pneg %p289
        $region46: #{cross_attention_layer.1} parent=11 // pred_check_branch
          %598 = sbr.rel (%p596) target = $region48
        $region47: #{cross_attention_layer.1} parent=11 // pred_region
          %600 = vsyncadd [#allocation12], 0
          %s602 = sshll.u32 %s10, 4
          %s603 = int_to_ptr.hbm [resolvable:$true] %s602
          %s604 = sshll.u32 [#allocation13], 4
          %s605 = int_to_ptr.vmem [resolvable:$true] %s604
          %607 = dma.hbm_to_vmem [thread:$0]  %s603, 16, %s605, [#allocation12]
        $region48: #{cross_attention_layer.1} parent=11 // pred_fallthru
          _
        // Predicated region
        $region49: #{cross_attention_layer.1} parent=11 // pred_check
          %p608 = pneg %p310
        $region50: #{cross_attention_layer.1} parent=11 // pred_check_branch
          %610 = sbr.rel (%p608) target = $region52
        $region51: #{cross_attention_layer.1} parent=11 // pred_region
          %612 = vsyncadd [#allocation15], 0
          %s614 = sshll.u32 %s11, 4
          %s615 = int_to_ptr.hbm [resolvable:$true] %s614
          %s616 = sshll.u32 [#allocation14], 4
          %s617 = int_to_ptr.vmem [resolvable:$true] %s616
          %619 = dma.hbm_to_vmem [thread:$0]  %s615, 16, %s617, [#allocation15]
        $region52: #{cross_attention_layer.1} parent=11 // pred_fallthru
          _
        // Predicated region
        $region53: #{cross_attention_layer.1} parent=11 // pred_check
          %p620 = pneg %p331
        $region54: #{cross_attention_layer.1} parent=11 // pred_check_branch
          %622 = sbr.rel (%p620) target = $region56
        $region55: #{cross_attention_layer.1} parent=11 // pred_region
          %624 = vsyncadd [#allocation15], 0
          %s626 = sshll.u32 %s12, 4
          %s627 = int_to_ptr.hbm [resolvable:$true] %s626
          %s628 = sshll.u32 [#allocation16], 4
          %s629 = int_to_ptr.vmem [resolvable:$true] %s628
          %631 = dma.hbm_to_vmem [thread:$0]  %s627, 16, %s629, [#allocation15]
        $region56: #{cross_attention_layer.1} parent=11 // pred_fallthru
          _
        // Predicated region
        $region57: #{cross_attention_layer.1} parent=11 // pred_check
          %p632 = pneg %p352
        $region58: #{cross_attention_layer.1} parent=11 // pred_check_branch
          %634 = sbr.rel (%p632) target = $region60
        $region59: #{cross_attention_layer.1} parent=11 // pred_region
          %636 = vsyncadd [#allocation18], 0
          %s638 = sshll.u32 %s13, 4
          %s639 = int_to_ptr.hbm [resolvable:$true] %s638
          %s640 = sshll.u32 [#allocation17], 4
          %s641 = int_to_ptr.vmem [resolvable:$true] %s640
          %643 = dma.hbm_to_vmem [thread:$0]  %s639, 16, %s641, [#allocation18]
        $region60: #{cross_attention_layer.1} parent=11 // pred_fallthru
          _
        // Predicated region
        $region61: #{cross_attention_layer.1} parent=11 // pred_check
          %p644 = pneg %p373
        $region62: #{cross_attention_layer.1} parent=11 // pred_check_branch
          %646 = sbr.rel (%p644) target = $region64
        $region63: #{cross_attention_layer.1} parent=11 // pred_region
          %648 = vsyncadd [#allocation18], 0
          %s650 = sshll.u32 %s14, 4
          %s651 = int_to_ptr.hbm [resolvable:$true] %s650
          %s652 = sshll.u32 [#allocation19], 4
          %s653 = int_to_ptr.vmem [resolvable:$true] %s652
          %655 = dma.hbm_to_vmem [thread:$0]  %s651, 16, %s653, [#allocation18]
        $region64: #{cross_attention_layer.1} parent=11 // pred_fallthru
          _
        // Predicated region
        $region65: #{cross_attention_layer.1} parent=11 // pred_check
          %p656 = pneg %p394
        $region66: #{cross_attention_layer.1} parent=11 // pred_check_branch
          %658 = sbr.rel (%p656) target = $region68
        $region67: #{cross_attention_layer.1} parent=11 // pred_region
          %660 = vsyncadd [#allocation21], 0
          %s662 = sshll.u32 %s15, 4
          %s663 = int_to_ptr.hbm [resolvable:$true] %s662
          %s664 = sshll.u32 [#allocation20], 4
          %s665 = int_to_ptr.vmem [resolvable:$true] %s664
          %667 = dma.hbm_to_vmem [thread:$0]  %s663, 16, %s665, [#allocation21]
        $region68: #{cross_attention_layer.1} parent=11 // pred_fallthru
          _
        // Predicated region
        $region69: #{cross_attention_layer.1} parent=11 // pred_check
          %p668 = pneg %p420
        $region70: #{cross_attention_layer.1} parent=11 // pred_check_branch
          %670 = sbr.rel (%p668) target = $region72
        $region71: #{cross_attention_layer.1} parent=11 // pred_region
          %672 = vsyncadd [#allocation21], 0
          %s673 = smul.addr %s46, 4
          %s674 = scalar_lea.hbm %s16, %s673
          %s675 = sshll.u32 %s674, 4
          %s676 = int_to_ptr.hbm [resolvable:$true] %s675
          %s677 = sshll.u32 [#allocation22], 4
          %s678 = int_to_ptr.vmem [resolvable:$true] %s677
          %683 = dma.hbm_to_vmem [thread:$0]  %s676, 256, %s678, [#allocation21], 64, 64, 4
        $region72: #{cross_attention_layer.1} parent=11 // pred_fallthru
          _
        // Predicated region
        $region73: #{cross_attention_layer.1} parent=11 // pred_check
          %p684 = pneg %p446
        $region74: #{cross_attention_layer.1} parent=11 // pred_check_branch
          %686 = sbr.rel (%p684) target = $region76
        $region75: #{cross_attention_layer.1} parent=11 // pred_region
          %688 = vsyncadd [#allocation24], 0
          %s689 = scalar_lea.hbm %s17, %s46
          %s691 = sshll.u32 %s689, 4
          %s692 = int_to_ptr.hbm [resolvable:$true] %s691
          %s693 = sshll.u32 [#allocation23], 4
          %s694 = int_to_ptr.vmem [resolvable:$true] %s693
          %696 = dma.hbm_to_vmem [thread:$0]  %s692, 16, %s694, [#allocation24]
        $region76: #{cross_attention_layer.1} parent=11 // pred_fallthru
          _
        // Predicated region
        $region77: #{cross_attention_layer.1} parent=11 // pred_check
          %p697 = pneg %p472
        $region78: #{cross_attention_layer.1} parent=11 // pred_check_branch
          %699 = sbr.rel (%p697) target = $region80
        $region79: #{cross_attention_layer.1} parent=11 // pred_region
          %s700 = smul.u32 16, %s46
          %p701 = scmp.lt.s32.totalorder %s700, 15
          %s702 = scalar_select %p701, %s700, 15
          %s703 = smul.addr %s702, 4
          %s704 = scalar_lea.vmem %s18, %s703
          %s705 = smul.u32 16, %s46
        $region80: #{cross_attention_layer.1} parent=11 // pred_fallthru
          _
        // Predicated region
        $region81: #{cross_attention_layer.1} parent=11 // pred_check
          %p706 = pneg %p493
        $region82: #{cross_attention_layer.1} parent=11 // pred_check_branch
          %708 = sbr.rel (%p706) target = $region84
        $region83: #{cross_attention_layer.1} parent=11 // pred_region
          %710 = vsyncadd [#allocation24], 0
          %s712 = sshll.u32 %s19, 4
          %s713 = int_to_ptr.hbm [resolvable:$true] %s712
          %s714 = sshll.u32 [#allocation25], 4
          %s715 = int_to_ptr.vmem [resolvable:$true] %s714
          %717 = dma.hbm_to_vmem [thread:$0]  %s713, 16, %s715, [#allocation24]
        $region84: #{cross_attention_layer.1} parent=11 // pred_fallthru
          _
      $region12: #{cross_attention_layer.1} parent=5 // pred_fallthru
        _
      %p718 = scmp.lt.s32.totalorder %s36, 2
      // Predicated region
      $region85: #{cross_attention_layer.1} parent=5 // pred_check
        %p719 = pneg %p718
      $region86: #{cross_attention_layer.1} parent=5 // pred_check_branch
        %721 = sbr.rel (%p719) target = $region88
      $region87: #{cross_attention_layer.1} parent=5 // pred_region
        // Predicated region
        $region89: #{cross_attention_layer.1} parent=87 // pred_check
          %p722 = pneg %p68
        $region90: #{cross_attention_layer.1} parent=87 // pred_check_branch
          %724 = sbr.rel (%p722) target = $region92
        $region91: #{cross_attention_layer.1} parent=87 // pred_region
          %p725 = scmp.lt.s32.totalorder %s43, 1
          %s726 = scalar_select %p725, %s43, 1
          %s727 = smul.addr %s726, 2
          %s728 = smul.addr %s727, 8
          %s729 = scalar_lea.vmem %s0, %s728
        $region92: #{cross_attention_layer.1} parent=87 // pred_fallthru
          _
        // Predicated region
        $region93: #{cross_attention_layer.1} parent=87 // pred_check
          %p730 = pneg %p94
        $region94: #{cross_attention_layer.1} parent=87 // pred_check_branch
          %732 = sbr.rel (%p730) target = $region96
        $region95: #{cross_attention_layer.1} parent=87 // pred_region
          %p733 = scmp.lt.s32.totalorder %s43, 1
          %s734 = scalar_select %p733, %s43, 1
          %s735 = smul.addr %s734, 8
          %s736 = scalar_lea.vmem %s1, %s735
        $region96: #{cross_attention_layer.1} parent=87 // pred_fallthru
          _
      $region88: #{cross_attention_layer.1} parent=5 // pred_fallthru
        _
      %p737 = scmp.le.s32.totalorder 1, %s36
      %p738 = scmp.lt.s32.totalorder %s36, 3
      %p739 = pnand %p737, %p738
      %p740 = pneg %p739
      // Predicated region
      $region97: #{cross_attention_layer.1} parent=5 // pred_check
        _
      $region98: #{cross_attention_layer.1} parent=5 // pred_check_branch
        %742 = sbr.rel (%p739) target = $region100
      $region99: #{cross_attention_layer.1} parent=5 // pred_region
        %s743 = ssub.s32 %s36, 1
        // Predicated region
        $region101: #{cross_attention_layer.1} parent=99 // pred_check
          %p744 = pneg %p184
        $region102: #{cross_attention_layer.1} parent=99 // pred_check_branch
          %746 = sbr.rel (%p744) target = $region104
        $region103: #{cross_attention_layer.1} parent=99 // pred_region
          %748 = dma.done [#allocation6], 16
        $region104: #{cross_attention_layer.1} parent=99 // pred_fallthru
          _
        // Predicated region
        $region105: #{cross_attention_layer.1} parent=99 // pred_check
          %p749 = pneg %p226
        $region106: #{cross_attention_layer.1} parent=99 // pred_check_branch
          %751 = sbr.rel (%p749) target = $region108
        $region107: #{cross_attention_layer.1} parent=99 // pred_region
          %753 = dma.done [#allocation9], 16
        $region108: #{cross_attention_layer.1} parent=99 // pred_fallthru
          _
        // Predicated region
        $region109: #{cross_attention_layer.1} parent=99 // pred_check
          %p754 = pneg %p247
        $region110: #{cross_attention_layer.1} parent=99 // pred_check_branch
          %756 = sbr.rel (%p754) target = $region112
        $region111: #{cross_attention_layer.1} parent=99 // pred_region
          %758 = dma.done [#allocation9], 256
        $region112: #{cross_attention_layer.1} parent=99 // pred_fallthru
          _
        // Predicated region
        $region113: #{cross_attention_layer.1} parent=99 // pred_check
          %p759 = pneg %p268
        $region114: #{cross_attention_layer.1} parent=99 // pred_check_branch
          %761 = sbr.rel (%p759) target = $region116
        $region115: #{cross_attention_layer.1} parent=99 // pred_region
          %763 = dma.done [#allocation12], 16
        $region116: #{cross_attention_layer.1} parent=99 // pred_fallthru
          _
        // Predicated region
        $region117: #{cross_attention_layer.1} parent=99 // pred_check
          %p764 = pneg %p289
        $region118: #{cross_attention_layer.1} parent=99 // pred_check_branch
          %766 = sbr.rel (%p764) target = $region120
        $region119: #{cross_attention_layer.1} parent=99 // pred_region
          %768 = dma.done [#allocation12], 16
        $region120: #{cross_attention_layer.1} parent=99 // pred_fallthru
          _
        // Predicated region
        $region121: #{cross_attention_layer.1} parent=99 // pred_check
          %p769 = pneg %p310
        $region122: #{cross_attention_layer.1} parent=99 // pred_check_branch
          %771 = sbr.rel (%p769) target = $region124
        $region123: #{cross_attention_layer.1} parent=99 // pred_region
          %773 = dma.done [#allocation15], 16
        $region124: #{cross_attention_layer.1} parent=99 // pred_fallthru
          _
        // Predicated region
        $region125: #{cross_attention_layer.1} parent=99 // pred_check
          %p774 = pneg %p331
        $region126: #{cross_attention_layer.1} parent=99 // pred_check_branch
          %776 = sbr.rel (%p774) target = $region128
        $region127: #{cross_attention_layer.1} parent=99 // pred_region
          %778 = dma.done [#allocation15], 16
        $region128: #{cross_attention_layer.1} parent=99 // pred_fallthru
          _
        // Predicated region
        $region129: #{cross_attention_layer.1} parent=99 // pred_check
          %p779 = pneg %p352
        $region130: #{cross_attention_layer.1} parent=99 // pred_check_branch
          %781 = sbr.rel (%p779) target = $region132
        $region131: #{cross_attention_layer.1} parent=99 // pred_region
          %783 = dma.done [#allocation18], 16
        $region132: #{cross_attention_layer.1} parent=99 // pred_fallthru
          _
        // Predicated region
        $region133: #{cross_attention_layer.1} parent=99 // pred_check
          %p784 = pneg %p373
        $region134: #{cross_attention_layer.1} parent=99 // pred_check_branch
          %786 = sbr.rel (%p784) target = $region136
        $region135: #{cross_attention_layer.1} parent=99 // pred_region
          %788 = dma.done [#allocation18], 16
        $region136: #{cross_attention_layer.1} parent=99 // pred_fallthru
          _
        // Predicated region
        $region137: #{cross_attention_layer.1} parent=99 // pred_check
          %p789 = pneg %p394
        $region138: #{cross_attention_layer.1} parent=99 // pred_check_branch
          %791 = sbr.rel (%p789) target = $region140
        $region139: #{cross_attention_layer.1} parent=99 // pred_region
          %793 = dma.done [#allocation21], 16
        $region140: #{cross_attention_layer.1} parent=99 // pred_fallthru
          _
        // Predicated region
        $region141: #{cross_attention_layer.1} parent=99 // pred_check
          %p794 = pneg %p420
        $region142: #{cross_attention_layer.1} parent=99 // pred_check_branch
          %796 = sbr.rel (%p794) target = $region144
        $region143: #{cross_attention_layer.1} parent=99 // pred_region
          %798 = dma.done [#allocation21], 256
        $region144: #{cross_attention_layer.1} parent=99 // pred_fallthru
          _
        // Predicated region
        $region145: #{cross_attention_layer.1} parent=99 // pred_check
          %p799 = pneg %p446
        $region146: #{cross_attention_layer.1} parent=99 // pred_check_branch
          %801 = sbr.rel (%p799) target = $region148
        $region147: #{cross_attention_layer.1} parent=99 // pred_region
          %803 = dma.done [#allocation24], 16
        $region148: #{cross_attention_layer.1} parent=99 // pred_fallthru
          _
        // Predicated region
        $region149: #{cross_attention_layer.1} parent=99 // pred_check
          %p804 = pneg %p493
        $region150: #{cross_attention_layer.1} parent=99 // pred_check_branch
          %806 = sbr.rel (%p804) target = $region152
        $region151: #{cross_attention_layer.1} parent=99 // pred_region
          %808 = dma.done [#allocation24], 16
        $region152: #{cross_attention_layer.1} parent=99 // pred_fallthru
          _
        %p809 = scmp.lt.s32.totalorder %s45, 1
        %s810 = scalar_select %p809, %s45, 1
        %s811 = smul.addr %s810, 2
        %s812 = smul.addr %s811, 8
        %s813 = scalar_lea.vmem %s0, %s812
        %p814 = pneg %p74
        %p815 = pneg %p71
        %p816 = scmp.lt.s32.totalorder %s45, 1
        %s817 = scalar_select %p816, %s45, 1
        %s818 = smul.addr %s817, 8
        %s819 = scalar_lea.vmem %s1, %s818
        %p820 = pneg %p100
        %p821 = pneg %p97
        %p822 = pneg %p121
        %p823 = pneg %p118
        %p824 = pneg %p142
        %p825 = pneg %p139
        %p826 = pneg %p163
        %p827 = pneg %p160
        %p828 = pneg %p184
        %p829 = pneg %p181
        %p830 = pneg %p205
        %p831 = pneg %p202
        %p832 = pneg %p226
        %p833 = pneg %p223
        %p834 = pneg %p247
        %p835 = pneg %p244
        %p836 = pneg %p268
        %p837 = pneg %p265
        %p838 = pneg %p289
        %p839 = pneg %p286
        %p840 = pneg %p310
        %p841 = pneg %p307
        %p842 = pneg %p331
        %p843 = pneg %p328
        %p844 = pneg %p352
        %p845 = pneg %p349
        %p846 = pneg %p373
        %p847 = pneg %p370
        %p848 = pneg %p394
        %p849 = pneg %p391
        %p850 = pneg %p420
        %p851 = pneg %p417
        %p852 = pneg %p446
        %p853 = pneg %p443
        %s854 = smul.u32 16, %s46
        %p855 = scmp.lt.s32.totalorder %s854, 15
        %s856 = scalar_select %p855, %s854, 15
        %s857 = smul.addr %s856, 4
        %s858 = scalar_lea.vmem %s18, %s857
        %p859 = pneg %p472
        %p860 = pneg %p469
        %p861 = pneg %p493
        %p862 = pneg %p490
        %p863 = pneg %p519
        %p864 = pneg %p516
        %s865 = sand.u32 %s506, 1
        %s866 = scalar_lea.sflag [#allocation7], %s865
        %s867 = sand.u32 %s506, 1
        %s868 = smul.addr %s867, 16
        %s869 = scalar_lea.vmem [#allocation26], %s868
        %p870 = scmp.lt.s32.totalorder %s45, 1
        %s871 = scalar_select %p870, %s45, 1
        %s872 = smul.addr %s871, 2
        %s873 = smul.addr %s872, 8
        %s874 = scalar_lea.vmem %s0, %s873
        %p875 = scmp.lt.s32.totalorder %s45, 1
        %s876 = scalar_select %p875, %s45, 1
        %s877 = smul.addr %s876, 8
        %s878 = scalar_lea.vmem %s1, %s877
        %s879 = smul.u32 16, %s46
        %p880 = scmp.lt.s32.totalorder %s879, 15
        %s881 = scalar_select %p880, %s879, 15
        %s882 = smul.addr %s881, 4
        %s883 = scalar_lea.vmem %s18, %s882
        %s884 = smul.u32 16, %s46
        %p886 = scmp.eq.s32.totalorder %s46, 0
        // Predicated region
        $region153: #{cross_attention_layer.1} parent=99 // pred_check
          %p887 = pneg %p886
        $region154: #{cross_attention_layer.1} parent=99 // pred_check_branch
          %889 = sbr.rel (%p887) target = $region156
        $region155: #{cross_attention_layer.1} parent=99 // pred_region
          %v890 = vld [vmem:[%s874] sm:$0xff]
          %v891 = vld [vmem:[%s874 + $0x8] sm:$0xff]
          %v892 = vld [vmem:[%s878] sm:$0xff]
          %v893 = vld [vmem:[#allocation13] sm:$0x1]
          %v894 = vld [vmem:[#allocation14] sm:$0x1]
          %vm895 = vcmask 261120
          %v896 = vsel %vm895, %v890, 0.0
          %897 = vadd.xlane.f32.xlu0 %v896
          %v898 = vpop.xlane.xlu0 %897
          %v899 = vsel %vm895, %v891, 0.0
          %900 = vadd.xlane.f32.xlu0 %v899
          %v901 = vpop.xlane.xlu0 %900
          %v902 = vrcp.pop 32.0
          %v903 = vmul.f32 32.0, %v902
          %v904 = vsub.f32 1.0, %v903
          %v905 = vmul.f32 %v902, %v904
          %v906 = vadd.f32 %v902, %v905
          %vm907 = vweird.f32 %v902
          %v908 = vsel %vm907, %v902, %v906
          %v909 = vmul.f32 %v898, %v908
          %v910 = vmul.f32 %v901, %v908
          %v911 = vsub.f32 %v890, %v909
          %v912 = vsub.f32 %v891, %v910
          %v913 = vmul.f32 %v911, %v911
          %v914 = vmul.f32 %v912, %v912
          %v915 = vsel %vm895, %v913, 0.0
          %916 = vadd.xlane.f32.xlu0 %v915
          %v917 = vpop.xlane.xlu0 %916
          %v918 = vsel %vm895, %v914, 0.0
          %919 = vadd.xlane.f32.xlu0 %v918
          %v920 = vpop.xlane.xlu0 %919
          %v921 = vmul.f32 %v917, %v908
          %v922 = vmul.f32 %v920, %v908
          %v923 = vadd.f32 %v921, 1e-05
          %v924 = vadd.f32 %v922, 1e-05
          %v925 = vrsqrt.pop %v923
          %v926 = vmul.f32 %v925, %v923
          %v927 = vmul.f32 %v926, %v925
          %v928 = vmul.f32 0.5, %v927
          %v929 = vsub.f32 1.5, %v928
          %v930 = vmul.f32 %v925, %v929
          %vm931 = vweird.f32 %v923
          %vm932 = vweird.f32 %v925
          %vm933 = vmor %vm931, %vm932
          %v934 = vsel %vm933, %v925, %v930
          %v935 = vrsqrt.pop %v924
          %v936 = vmul.f32 %v935, %v924
          %v937 = vmul.f32 %v936, %v935
          %v938 = vmul.f32 0.5, %v937
          %v939 = vsub.f32 1.5, %v938
          %v940 = vmul.f32 %v935, %v939
          %vm941 = vweird.f32 %v924
          %vm942 = vweird.f32 %v935
          %vm943 = vmor %vm941, %vm942
          %v944 = vsel %vm943, %v935, %v940
          %v945 = vmul.f32 %v911, %v934
          %v946 = vmul.f32 %v912, %v944
          %v948 = vperm.slane %v893, 0
          %v950 = vmul.f32 %v945, %v948
          %v951 = vmul.f32 %v946, %v948
          %v953 = vperm.slane %v894, 0
          %v955 = vadd.f32 %v950, %v953
          %v956 = vadd.f32 %v951, %v953
          %v957 = vld [vmem:[#allocation16] sm:$0x1]
          %v958 = vld [vmem:[#allocation17] sm:$0x1]
          %v959 = vsel %vm895, %v892, 0.0
          %960 = vadd.xlane.f32.xlu0 %v959
          %v961 = vpop.xlane.xlu0 %960
          %v962 = vmul.f32 %v961, %v908
          %v963 = vsub.f32 %v892, %v962
          %v964 = vmul.f32 %v963, %v963
          %v965 = vsel %vm895, %v964, 0.0
          %966 = vadd.xlane.f32.xlu0 %v965
          %v967 = vpop.xlane.xlu0 %966
          %v968 = vmul.f32 %v967, %v908
          %v969 = vadd.f32 %v968, 1e-05
          %v970 = vrsqrt.pop %v969
          %v971 = vmul.f32 %v970, %v969
          %v972 = vmul.f32 %v971, %v970
          %v973 = vmul.f32 0.5, %v972
          %v974 = vsub.f32 1.5, %v973
          %v975 = vmul.f32 %v970, %v974
          %vm976 = vweird.f32 %v969
          %vm977 = vweird.f32 %v970
          %vm978 = vmor %vm976, %vm977
          %v979 = vsel %vm978, %v970, %v975
          %v980 = vmul.f32 %v963, %v979
          %v982 = vperm.slane %v957, 0
          %v984 = vmul.f32 %v980, %v982
          %v986 = vperm.slane %v958, 0
          %v988 = vadd.f32 %v984, %v986
          %v989 = vpack.c.bf16 %v956, %v955
          %v990 = vpack.c.bf16 %v988, %v988
          %v991 = vld [vmem:[%s2] sm:$0xf]
          %v992 = vld [vmem:[%s2 + $0x4] sm:$0xf]
          %v993 = vld [vmem:[%s2 + $0x8] sm:$0xf]
          %v994 = vld [vmem:[%s2 + $0xc] sm:$0xf]
          %v995 = vld [vmem:[%s3] sm:$0x1]
          %v997 = vperm.slane %v995, 0
          %v1003 = vunpack.c.l.b16 %v991
          %v1004 = vunpack.c.l.b16 %v992
          %v1005 = vunpack.c.l.b16 %v993
          %v1006 = vunpack.c.l.b16 %v994
          %v1007 = vpack.c.b16 %v1004, %v1003
          %v1008 = vpack.c.b16 %v1006, %v1005
          %v1012 = vsel %vm895, %v989, 0
          %1014 = vmatpush.bf16.msra.mxu0 0
          %1015 = vmatpush.bf16.msra.mxu0 0
          %1016 = vmatpush.bf16.msra.mxu0 0
          %1017 = vmatpush.bf16.msra.mxu0 0
          %1018 = vmatpush.bf16.msra.mxu0 0
          %1019 = vmatpush.bf16.msra.mxu0 0
          %1020 = vmatpush.bf16.msra.mxu0 %v1008
          %1021 = vmatpush.bf16.msra.mxu0 %v1007
          %1022 = vmatmul.bf16.gmra.mxu0 %v1012
          %v1023 = vpop.f32.mrf.mxu0
          %v1024 = vadd.f32 %v997, %v1023
          %v1025 = vpop.f32.mrf.mxu0
          %v1026 = vadd.f32 %v997, %v1025
          %1027 = vdwg.mxu0
          %v1028 = vld [vmem:[%s4] sm:$0xf]
          %v1029 = vld [vmem:[%s4 + $0x4] sm:$0xf]
          %v1030 = vld [vmem:[%s4 + $0x8] sm:$0xf]
          %v1031 = vld [vmem:[%s4 + $0xc] sm:$0xf]
          %v1032 = vld [vmem:[#allocation5] sm:$0x1]
          %v1034 = vperm.slane %v1032, 0
          %v1040 = vunpack.c.l.b16 %v1028
          %v1041 = vunpack.c.l.b16 %v1029
          %v1042 = vunpack.c.l.b16 %v1030
          %v1043 = vunpack.c.l.b16 %v1031
          %v1044 = vpack.c.b16 %v1041, %v1040
          %v1045 = vpack.c.b16 %v1043, %v1042
          %v1049 = vsel %vm895, %v990, 0
          %1051 = vmatpush.bf16.msra.mxu0 0
          %1052 = vmatpush.bf16.msra.mxu0 0
          %1053 = vmatpush.bf16.msra.mxu0 0
          %1054 = vmatpush.bf16.msra.mxu0 0
          %1055 = vmatpush.bf16.msra.mxu0 0
          %1056 = vmatpush.bf16.msra.mxu0 0
          %1057 = vmatpush.bf16.msra.mxu0 %v1045
          %1058 = vmatpush.bf16.msra.mxu0 %v1044
          %1059 = vmatmul.bf16.gmra.mxu0 %v1049
          %v1060 = vpop.f32.mrf.mxu0
          %v1061 = vadd.f32 %v1034, %v1060
          %v1062 = vpop.f32.mrf.mxu0
          %1063 = vdwg.mxu0
          %v1064 = vld [vmem:[%s6] sm:$0xf]
          %v1065 = vld [vmem:[%s6 + $0x4] sm:$0xf]
          %v1066 = vld [vmem:[%s6 + $0x8] sm:$0xf]
          %v1067 = vld [vmem:[%s6 + $0xc] sm:$0xf]
          %v1068 = vld [vmem:[#allocation8] sm:$0x1]
          %v1070 = vperm.slane %v1068, 0
          %v1076 = vunpack.c.l.b16 %v1064
          %v1077 = vunpack.c.l.b16 %v1065
          %v1078 = vunpack.c.l.b16 %v1066
          %v1079 = vunpack.c.l.b16 %v1067
          %v1080 = vpack.c.b16 %v1077, %v1076
          %v1081 = vpack.c.b16 %v1079, %v1078
          %1084 = vmatpush.bf16.msra.mxu0 0
          %1085 = vmatpush.bf16.msra.mxu0 0
          %1086 = vmatpush.bf16.msra.mxu0 0
          %1087 = vmatpush.bf16.msra.mxu0 0
          %1088 = vmatpush.bf16.msra.mxu0 0
          %1089 = vmatpush.bf16.msra.mxu0 0
          %1090 = vmatpush.bf16.msra.mxu0 %v1081
          %1091 = vmatpush.bf16.msra.mxu0 %v1080
          %1092 = vmatmul.bf16.gmra.mxu0 %v1049
          %v1093 = vpop.f32.mrf.mxu0
          %v1094 = vadd.f32 %v1070, %v1093
          %v1095 = vpop.f32.mrf.mxu0
          %1096 = vdwg.mxu0
          %v1097 = vmul.f32 %v1024, 0.35355338
          %v1098 = vmul.f32 %v1026, 0.35355338
          %v1099 = vpack.c.bf16 %v1097, %v1097
          %v1100 = vpack.c.bf16 %v1098, %v1098
          %v1101 = vpack.c.bf16 %v1061, %v1061
          %v1102 = vpack.c.bf16 %v1094, %v1094
          %v1103 = vld [vmem:[#allocation11] sm:$0x1]
          %v1105 = vperm.slane %v1103, 0
          %v1107 = vadd.f32 %v890, %v1105
          %v1108 = vadd.f32 %v891, %v1105
          %1109 = vst.msk [vmem:[#allocation2] sm:$0xff] %vm895, %v1107
          %1110 = vst.msk [vmem:[#allocation2 + $0x8] sm:$0xff] %vm895, %v1108
          %v1113 = vunpack.c.l.b16 %v1099
          %v1114 = vunpack.c.l.b16 %v1100
          %v1115 = vpack.c.b16 %v1114, %v1113
          %vm1116 = vcmask 64512
          %v1118 = vsel %vm1116, %v1115, 0
          %v1121 = vsel %vm1116, %v1101, 0
          %1123 = vmatpush.bf16.xpose.msra.mxu0 0
          %1124 = vmatpush.bf16.xpose.msra.mxu0 0
          %1125 = vmatpush.bf16.xpose.msra.mxu0 0
          %1126 = vmatpush.bf16.xpose.msra.mxu0 0
          %1127 = vmatpush.bf16.xpose.msra.mxu0 0
          %1128 = vmatpush.bf16.xpose.msra.mxu0 0
          %1129 = vmatpush.bf16.xpose.msra.mxu0 0
          %1130 = vmatpush.bf16.xpose.msra.mxu0 %v1121
          %1131 = vmatmul.bf16.gmra.mxu0 %v1118
          %v1132 = vpop.f32.mrf.mxu0
          %v1133 = vadd.f32 0.0, %v1132
          %v1134 = vpop.f32.mrf.mxu0
          %v1135 = vadd.f32 0.0, %v1134
          %1136 = vdwg.mxu0
          %v1137 = vsel %vm1116, %v1133, -inf
          %1138 = vmax.xlane.f32.xlu0 %v1137
          %v1139 = vpop.xlane.xlu0 %1138
          %v1140 = vsel %vm1116, %v1135, -inf
          %1141 = vmax.xlane.f32.xlu0 %v1140
          %v1142 = vpop.xlane.xlu0 %1141
          %v1143 = vsub.f32 %v1133, %v1139
          %v1144 = vsub.f32 %v1135, %v1142
          %v1145 = vmul.f32 %v1143, 1.442695
          %v1146 = vpow.pop %v1145
          %v1147 = vmul.f32 %v1144, 1.442695
          %v1148 = vpow.pop %v1147
          %v1149 = vsel %vm1116, %v1146, 0.0
          %1150 = vadd.xlane.f32.xlu0 %v1149
          %v1151 = vpop.xlane.xlu0 %1150
          %v1152 = vsel %vm1116, %v1148, 0.0
          %1153 = vadd.xlane.f32.xlu0 %v1152
          %v1154 = vpop.xlane.xlu0 %1153
          %v1155 = vrcp.pop %v1151
          %v1156 = vmul.f32 %v1151, %v1155
          %v1157 = vsub.f32 1.0, %v1156
          %v1158 = vmul.f32 %v1155, %v1157
          %v1159 = vadd.f32 %v1155, %v1158
          %vm1160 = vweird.f32 %v1151
          %vm1161 = vweird.f32 %v1155
          %vm1162 = vmor %vm1160, %vm1161
          %v1163 = vsel %vm1162, %v1155, %v1159
          %v1164 = vand.u32 2147483647, %v1151
          %vm1165 = vcmp.eq.f32.partialorder %v1164, 8.507059e+37
          %v1166 = vand.u32 %v1151, 2147483648
          %v1167 = vor.u32 1.1754944e-38, %v1166
          %v1168 = vsel %vm1165, %v1167, %v1163
          %v1169 = vmul.f32 %v1146, %v1168
          %v1170 = vrcp.pop %v1154
          %v1171 = vmul.f32 %v1154, %v1170
          %v1172 = vsub.f32 1.0, %v1171
          %v1173 = vmul.f32 %v1170, %v1172
          %v1174 = vadd.f32 %v1170, %v1173
          %vm1175 = vweird.f32 %v1154
          %vm1176 = vweird.f32 %v1170
          %vm1177 = vmor %vm1175, %vm1176
          %v1178 = vsel %vm1177, %v1170, %v1174
          %v1179 = vand.u32 2147483647, %v1154
          %vm1180 = vcmp.eq.f32.partialorder %v1179, 8.507059e+37
          %v1181 = vand.u32 %v1154, 2147483648
          %v1182 = vor.u32 1.1754944e-38, %v1181
          %v1183 = vsel %vm1180, %v1182, %v1178
          %v1184 = vmul.f32 %v1148, %v1183
          %v1185 = vpack.c.bf16 %v1169, %v1169
          %v1186 = vpack.c.bf16 %v1184, %v1184
          %v1189 = vunpack.c.l.b16 %v1185
          %v1190 = vunpack.c.l.b16 %v1186
          %v1191 = vpack.c.b16 %v1190, %v1189
          %v1193 = vsel %vm1116, %v1191, 0
          %vm1195 = vcmask 1043456
          %v1197 = vsel %vm1195, %v1102, 0
          %1199 = vmatpush.bf16.msra.mxu0 0
          %1200 = vmatpush.bf16.msra.mxu0 0
          %1201 = vmatpush.bf16.msra.mxu0 0
          %1202 = vmatpush.bf16.msra.mxu0 0
          %1203 = vmatpush.bf16.msra.mxu0 0
          %1204 = vmatpush.bf16.msra.mxu0 0
          %1205 = vmatpush.bf16.msra.mxu0 0
          %1206 = vmatpush.bf16.msra.mxu0 %v1197
          %1207 = vmatmul.bf16.gmra.mxu0 %v1193
          %v1208 = vpop.f32.mrf.mxu0
          %v1209 = vadd.f32 0.0, %v1208
          %v1210 = vpop.f32.mrf.mxu0
          %v1211 = vadd.f32 0.0, %v1210
          %1212 = vdwg.mxu0
          %v1213 = vld [vmem:[#allocation2] sm:$0xff]
          %v1214 = vld [vmem:[#allocation2 + $0x8] sm:$0xff]
          %v1215 = vpack.c.bf16 %v1211, %v1209
          %v1216 = vld [vmem:[#allocation10] sm:$0xf]
          %v1218 = vsel %vm1116, %v1215, 0
          %v1221 = vsel %vm1195, %v1216, 0
          %1223 = vmatpush.bf16.msra.mxu0 0
          %1224 = vmatpush.bf16.msra.mxu0 0
          %1225 = vmatpush.bf16.msra.mxu0 0
          %1226 = vmatpush.bf16.msra.mxu0 0
          %1227 = vmatpush.bf16.msra.mxu0 0
          %1228 = vmatpush.bf16.msra.mxu0 0
          %1229 = vmatpush.bf16.msra.mxu0 0
          %1230 = vmatpush.bf16.msra.mxu0 %v1221
          %1231 = vmatmul.bf16.gmra.mxu0 %v1218
          %v1232 = vpop.f32.mrf.mxu0
          %v1233 = vadd.f32 0.0, %v1232
          %v1234 = vpop.f32.mrf.mxu0
          %v1235 = vadd.f32 0.0, %v1234
          %1236 = vdwg.mxu0
          %v1237 = vadd.f32 %v1213, %v1233
          %v1238 = vadd.f32 %v1214, %v1235
          %1239 = vst.msk [vmem:[#allocation2] sm:$0xff] %vm895, %v1237
          %1240 = vst.msk [vmem:[#allocation2 + $0x8] sm:$0xff] %vm895, %v1238
          %1241 = vrot.lane.b32.xlu0 %v1115, 120
          %v1242 = vpop.permute.xlu0 %1241
          %v1244 = vunpack.c.l.b16 %v1101
          %v1245 = vpack.c.b16 %v1244, %v1244
          %1246 = vrot.lane.b32.xlu0 %v1245, 120
          %v1247 = vpop.permute.xlu0 %1246
          %v1249 = vsel %vm1116, %v1242, 0
          %v1252 = vsel %vm1116, %v1247, 0
          %1254 = vmatpush.bf16.xpose.msra.mxu0 0
          %1255 = vmatpush.bf16.xpose.msra.mxu0 0
          %1256 = vmatpush.bf16.xpose.msra.mxu0 0
          %1257 = vmatpush.bf16.xpose.msra.mxu0 0
          %1258 = vmatpush.bf16.xpose.msra.mxu0 0
          %1259 = vmatpush.bf16.xpose.msra.mxu0 0
          %1260 = vmatpush.bf16.xpose.msra.mxu0 0
          %1261 = vmatpush.bf16.xpose.msra.mxu0 %v1252
          %1262 = vmatmul.bf16.gmra.mxu0 %v1249
          %v1263 = vpop.f32.mrf.mxu0
          %v1264 = vadd.f32 0.0, %v1263
          %v1265 = vpop.f32.mrf.mxu0
          %v1266 = vadd.f32 0.0, %v1265
          %1267 = vdwg.mxu0
          %v1268 = vsel %vm1116, %v1264, -inf
          %1269 = vmax.xlane.f32.xlu0 %v1268
          %v1270 = vpop.xlane.xlu0 %1269
          %v1271 = vsel %vm1116, %v1266, -inf
          %1272 = vmax.xlane.f32.xlu0 %v1271
          %v1273 = vpop.xlane.xlu0 %1272
          %v1274 = vsub.f32 %v1264, %v1270
          %v1275 = vsub.f32 %v1266, %v1273
          %v1276 = vmul.f32 %v1274, 1.442695
          %v1277 = vpow.pop %v1276
          %v1278 = vmul.f32 %v1275, 1.442695
          %v1279 = vpow.pop %v1278
          %v1280 = vsel %vm1116, %v1277, 0.0
          %1281 = vadd.xlane.f32.xlu0 %v1280
          %v1282 = vpop.xlane.xlu0 %1281
          %v1283 = vsel %vm1116, %v1279, 0.0
          %1284 = vadd.xlane.f32.xlu0 %v1283
          %v1285 = vpop.xlane.xlu0 %1284
          %v1286 = vrcp.pop %v1282
          %v1287 = vmul.f32 %v1282, %v1286
          %v1288 = vsub.f32 1.0, %v1287
          %v1289 = vmul.f32 %v1286, %v1288
          %v1290 = vadd.f32 %v1286, %v1289
          %vm1291 = vweird.f32 %v1282
          %vm1292 = vweird.f32 %v1286
          %vm1293 = vmor %vm1291, %vm1292
          %v1294 = vsel %vm1293, %v1286, %v1290
          %v1295 = vand.u32 2147483647, %v1282
          %vm1296 = vcmp.eq.f32.partialorder %v1295, 8.507059e+37
          %v1297 = vand.u32 %v1282, 2147483648
          %v1298 = vor.u32 1.1754944e-38, %v1297
          %v1299 = vsel %vm1296, %v1298, %v1294
          %v1300 = vmul.f32 %v1277, %v1299
          %v1301 = vrcp.pop %v1285
          %v1302 = vmul.f32 %v1285, %v1301
          %v1303 = vsub.f32 1.0, %v1302
          %v1304 = vmul.f32 %v1301, %v1303
          %v1305 = vadd.f32 %v1301, %v1304
          %vm1306 = vweird.f32 %v1285
          %vm1307 = vweird.f32 %v1301
          %vm1308 = vmor %vm1306, %vm1307
          %v1309 = vsel %vm1308, %v1301, %v1305
          %v1310 = vand.u32 2147483647, %v1285
          %vm1311 = vcmp.eq.f32.partialorder %v1310, 8.507059e+37
          %v1312 = vand.u32 %v1285, 2147483648
          %v1313 = vor.u32 1.1754944e-38, %v1312
          %v1314 = vsel %vm1311, %v1313, %v1309
          %v1315 = vmul.f32 %v1279, %v1314
          %v1316 = vpack.c.bf16 %v1300, %v1300
          %v1317 = vpack.c.bf16 %v1315, %v1315
          %v1320 = vunpack.c.l.b16 %v1316
          %v1321 = vunpack.c.l.b16 %v1317
          %v1322 = vpack.c.b16 %v1321, %v1320
          %v1324 = vunpack.c.l.b16 %v1102
          %v1325 = vpack.c.b16 %v1324, %v1324
          %1326 = vrot.lane.b32.xlu0 %v1325, 120
          %v1327 = vpop.permute.xlu0 %1326
          %v1329 = vsel %vm1116, %v1322, 0
          %v1332 = vsel %vm1195, %v1327, 0
          %1334 = vmatpush.bf16.msra.mxu0 0
          %1335 = vmatpush.bf16.msra.mxu0 0
          %1336 = vmatpush.bf16.msra.mxu0 0
          %1337 = vmatpush.bf16.msra.mxu0 0
          %1338 = vmatpush.bf16.msra.mxu0 0
          %1339 = vmatpush.bf16.msra.mxu0 0
          %1340 = vmatpush.bf16.msra.mxu0 0
          %1341 = vmatpush.bf16.msra.mxu0 %v1332
          %1342 = vmatmul.bf16.gmra.mxu0 %v1329
          %v1343 = vpop.f32.mrf.mxu0
          %v1344 = vadd.f32 0.0, %v1343
          %v1345 = vpop.f32.mrf.mxu0
          %v1346 = vadd.f32 0.0, %v1345
          %1347 = vdwg.mxu0
          %v1348 = vld [vmem:[#allocation2] sm:$0xff]
          %v1349 = vld [vmem:[#allocation2 + $0x8] sm:$0xff]
          %v1350 = vpack.c.bf16 %v1346, %v1344
          %v1351 = vld [vmem:[#allocation10 + $0x4] sm:$0xf]
          %v1353 = vsel %vm1116, %v1350, 0
          %v1356 = vsel %vm1195, %v1351, 0
          %1358 = vmatpush.bf16.msra.mxu0 0
          %1359 = vmatpush.bf16.msra.mxu0 0
          %1360 = vmatpush.bf16.msra.mxu0 0
          %1361 = vmatpush.bf16.msra.mxu0 0
          %1362 = vmatpush.bf16.msra.mxu0 0
          %1363 = vmatpush.bf16.msra.mxu0 0
          %1364 = vmatpush.bf16.msra.mxu0 0
          %1365 = vmatpush.bf16.msra.mxu0 %v1356
          %1366 = vmatmul.bf16.gmra.mxu0 %v1353
          %v1367 = vpop.f32.mrf.mxu0
          %v1368 = vadd.f32 0.0, %v1367
          %v1369 = vpop.f32.mrf.mxu0
          %v1370 = vadd.f32 0.0, %v1369
          %1371 = vdwg.mxu0
          %v1372 = vadd.f32 %v1348, %v1368
          %v1373 = vadd.f32 %v1349, %v1370
          %1374 = vst.msk [vmem:[#allocation2] sm:$0xff] %vm895, %v1372
          %1375 = vst.msk [vmem:[#allocation2 + $0x8] sm:$0xff] %vm895, %v1373
          %1376 = vrot.lane.b32.xlu0 %v1115, 112
          %v1377 = vpop.permute.xlu0 %1376
          %1378 = vrot.lane.b32.xlu0 %v1245, 112
          %v1379 = vpop.permute.xlu0 %1378
          %v1381 = vsel %vm1116, %v1377, 0
          %v1384 = vsel %vm1116, %v1379, 0
          %1386 = vmatpush.bf16.xpose.msra.mxu0 0
          %1387 = vmatpush.bf16.xpose.msra.mxu0 0
          %1388 = vmatpush.bf16.xpose.msra.mxu0 0
          %1389 = vmatpush.bf16.xpose.msra.mxu0 0
          %1390 = vmatpush.bf16.xpose.msra.mxu0 0
          %1391 = vmatpush.bf16.xpose.msra.mxu0 0
          %1392 = vmatpush.bf16.xpose.msra.mxu0 0
          %1393 = vmatpush.bf16.xpose.msra.mxu0 %v1384
          %1394 = vmatmul.bf16.gmra.mxu0 %v1381
          %v1395 = vpop.f32.mrf.mxu0
          %v1396 = vadd.f32 0.0, %v1395
          %v1397 = vpop.f32.mrf.mxu0
          %v1398 = vadd.f32 0.0, %v1397
          %1399 = vdwg.mxu0
          %v1400 = vsel %vm1116, %v1396, -inf
          %1401 = vmax.xlane.f32.xlu0 %v1400
          %v1402 = vpop.xlane.xlu0 %1401
          %v1403 = vsel %vm1116, %v1398, -inf
          %1404 = vmax.xlane.f32.xlu0 %v1403
          %v1405 = vpop.xlane.xlu0 %1404
          %v1406 = vsub.f32 %v1396, %v1402
          %v1407 = vsub.f32 %v1398, %v1405
          %v1408 = vmul.f32 %v1406, 1.442695
          %v1409 = vpow.pop %v1408
          %v1410 = vmul.f32 %v1407, 1.442695
          %v1411 = vpow.pop %v1410
          %v1412 = vsel %vm1116, %v1409, 0.0
          %1413 = vadd.xlane.f32.xlu0 %v1412
          %v1414 = vpop.xlane.xlu0 %1413
          %v1415 = vsel %vm1116, %v1411, 0.0
          %1416 = vadd.xlane.f32.xlu0 %v1415
          %v1417 = vpop.xlane.xlu0 %1416
          %v1418 = vrcp.pop %v1414
          %v1419 = vmul.f32 %v1414, %v1418
          %v1420 = vsub.f32 1.0, %v1419
          %v1421 = vmul.f32 %v1418, %v1420
          %v1422 = vadd.f32 %v1418, %v1421
          %vm1423 = vweird.f32 %v1414
          %vm1424 = vweird.f32 %v1418
          %vm1425 = vmor %vm1423, %vm1424
          %v1426 = vsel %vm1425, %v1418, %v1422
          %v1427 = vand.u32 2147483647, %v1414
          %vm1428 = vcmp.eq.f32.partialorder %v1427, 8.507059e+37
          %v1429 = vand.u32 %v1414, 2147483648
          %v1430 = vor.u32 1.1754944e-38, %v1429
          %v1431 = vsel %vm1428, %v1430, %v1426
          %v1432 = vmul.f32 %v1409, %v1431
          %v1433 = vrcp.pop %v1417
          %v1434 = vmul.f32 %v1417, %v1433
          %v1435 = vsub.f32 1.0, %v1434
          %v1436 = vmul.f32 %v1433, %v1435
          %v1437 = vadd.f32 %v1433, %v1436
          %vm1438 = vweird.f32 %v1417
          %vm1439 = vweird.f32 %v1433
          %vm1440 = vmor %vm1438, %vm1439
          %v1441 = vsel %vm1440, %v1433, %v1437
          %v1442 = vand.u32 2147483647, %v1417
          %vm1443 = vcmp.eq.f32.partialorder %v1442, 8.507059e+37
          %v1444 = vand.u32 %v1417, 2147483648
          %v1445 = vor.u32 1.1754944e-38, %v1444
          %v1446 = vsel %vm1443, %v1445, %v1441
          %v1447 = vmul.f32 %v1411, %v1446
          %v1448 = vpack.c.bf16 %v1432, %v1432
          %v1449 = vpack.c.bf16 %v1447, %v1447
          %v1452 = vunpack.c.l.b16 %v1448
          %v1453 = vunpack.c.l.b16 %v1449
          %v1454 = vpack.c.b16 %v1453, %v1452
          %1455 = vrot.lane.b32.xlu0 %v1325, 112
          %v1456 = vpop.permute.xlu0 %1455
          %v1458 = vsel %vm1116, %v1454, 0
          %v1461 = vsel %vm1195, %v1456, 0
          %1463 = vmatpush.bf16.msra.mxu0 0
          %1464 = vmatpush.bf16.msra.mxu0 0
          %1465 = vmatpush.bf16.msra.mxu0 0
          %1466 = vmatpush.bf16.msra.mxu0 0
          %1467 = vmatpush.bf16.msra.mxu0 0
          %1468 = vmatpush.bf16.msra.mxu0 0
          %1469 = vmatpush.bf16.msra.mxu0 0
          %1470 = vmatpush.bf16.msra.mxu0 %v1461
          %1471 = vmatmul.bf16.gmra.mxu0 %v1458
          %v1472 = vpop.f32.mrf.mxu0
          %v1473 = vadd.f32 0.0, %v1472
          %v1474 = vpop.f32.mrf.mxu0
          %v1475 = vadd.f32 0.0, %v1474
          %1476 = vdwg.mxu0
          %v1477 = vld [vmem:[#allocation2] sm:$0xff]
          %v1478 = vld [vmem:[#allocation2 + $0x8] sm:$0xff]
          %v1479 = vpack.c.bf16 %v1475, %v1473
          %v1480 = vld [vmem:[#allocation10 + $0x8] sm:$0xf]
          %v1482 = vsel %vm1116, %v1479, 0
          %v1485 = vsel %vm1195, %v1480, 0
          %1487 = vmatpush.bf16.msra.mxu0 0
          %1488 = vmatpush.bf16.msra.mxu0 0
          %1489 = vmatpush.bf16.msra.mxu0 0
          %1490 = vmatpush.bf16.msra.mxu0 0
          %1491 = vmatpush.bf16.msra.mxu0 0
          %1492 = vmatpush.bf16.msra.mxu0 0
          %1493 = vmatpush.bf16.msra.mxu0 0
          %1494 = vmatpush.bf16.msra.mxu0 %v1485
          %1495 = vmatmul.bf16.gmra.mxu0 %v1482
          %v1496 = vpop.f32.mrf.mxu0
          %v1497 = vadd.f32 0.0, %v1496
          %v1498 = vpop.f32.mrf.mxu0
          %v1499 = vadd.f32 0.0, %v1498
          %1500 = vdwg.mxu0
          %v1501 = vadd.f32 %v1477, %v1497
          %v1502 = vadd.f32 %v1478, %v1499
          %1503 = vst.msk [vmem:[#allocation2] sm:$0xff] %vm895, %v1501
          %1504 = vst.msk [vmem:[#allocation2 + $0x8] sm:$0xff] %vm895, %v1502
          %1505 = vrot.lane.b32.xlu0 %v1115, 104
          %v1506 = vpop.permute.xlu0 %1505
          %1507 = vrot.lane.b32.xlu0 %v1245, 104
          %v1508 = vpop.permute.xlu0 %1507
          %v1510 = vsel %vm1116, %v1506, 0
          %v1513 = vsel %vm1116, %v1508, 0
          %1515 = vmatpush.bf16.xpose.msra.mxu0 0
          %1516 = vmatpush.bf16.xpose.msra.mxu0 0
          %1517 = vmatpush.bf16.xpose.msra.mxu0 0
          %1518 = vmatpush.bf16.xpose.msra.mxu0 0
          %1519 = vmatpush.bf16.xpose.msra.mxu0 0
          %1520 = vmatpush.bf16.xpose.msra.mxu0 0
          %1521 = vmatpush.bf16.xpose.msra.mxu0 0
          %1522 = vmatpush.bf16.xpose.msra.mxu0 %v1513
          %1523 = vmatmul.bf16.gmra.mxu0 %v1510
          %v1524 = vpop.f32.mrf.mxu0
          %v1525 = vadd.f32 0.0, %v1524
          %v1526 = vpop.f32.mrf.mxu0
          %v1527 = vadd.f32 0.0, %v1526
          %1528 = vdwg.mxu0
          %v1529 = vsel %vm1116, %v1525, -inf
          %1530 = vmax.xlane.f32.xlu0 %v1529
          %v1531 = vpop.xlane.xlu0 %1530
          %v1532 = vsel %vm1116, %v1527, -inf
          %1533 = vmax.xlane.f32.xlu0 %v1532
          %v1534 = vpop.xlane.xlu0 %1533
          %v1535 = vsub.f32 %v1525, %v1531
          %v1536 = vsub.f32 %v1527, %v1534
          %v1537 = vmul.f32 %v1535, 1.442695
          %v1538 = vpow.pop %v1537
          %v1539 = vmul.f32 %v1536, 1.442695
          %v1540 = vpow.pop %v1539
          %v1541 = vsel %vm1116, %v1538, 0.0
          %1542 = vadd.xlane.f32.xlu0 %v1541
          %v1543 = vpop.xlane.xlu0 %1542
          %v1544 = vsel %vm1116, %v1540, 0.0
          %1545 = vadd.xlane.f32.xlu0 %v1544
          %v1546 = vpop.xlane.xlu0 %1545
          %v1547 = vrcp.pop %v1543
          %v1548 = vmul.f32 %v1543, %v1547
          %v1549 = vsub.f32 1.0, %v1548
          %v1550 = vmul.f32 %v1547, %v1549
          %v1551 = vadd.f32 %v1547, %v1550
          %vm1552 = vweird.f32 %v1543
          %vm1553 = vweird.f32 %v1547
          %vm1554 = vmor %vm1552, %vm1553
          %v1555 = vsel %vm1554, %v1547, %v1551
          %v1556 = vand.u32 2147483647, %v1543
          %vm1557 = vcmp.eq.f32.partialorder %v1556, 8.507059e+37
          %v1558 = vand.u32 %v1543, 2147483648
          %v1559 = vor.u32 1.1754944e-38, %v1558
          %v1560 = vsel %vm1557, %v1559, %v1555
          %v1561 = vmul.f32 %v1538, %v1560
          %v1562 = vrcp.pop %v1546
          %v1563 = vmul.f32 %v1546, %v1562
          %v1564 = vsub.f32 1.0, %v1563
          %v1565 = vmul.f32 %v1562, %v1564
          %v1566 = vadd.f32 %v1562, %v1565
          %vm1567 = vweird.f32 %v1546
          %vm1568 = vweird.f32 %v1562
          %vm1569 = vmor %vm1567, %vm1568
          %v1570 = vsel %vm1569, %v1562, %v1566
          %v1571 = vand.u32 2147483647, %v1546
          %vm1572 = vcmp.eq.f32.partialorder %v1571, 8.507059e+37
          %v1573 = vand.u32 %v1546, 2147483648
          %v1574 = vor.u32 1.1754944e-38, %v1573
          %v1575 = vsel %vm1572, %v1574, %v1570
          %v1576 = vmul.f32 %v1540, %v1575
          %v1577 = vpack.c.bf16 %v1561, %v1561
          %v1578 = vpack.c.bf16 %v1576, %v1576
          %v1581 = vunpack.c.l.b16 %v1577
          %v1582 = vunpack.c.l.b16 %v1578
          %v1583 = vpack.c.b16 %v1582, %v1581
          %1584 = vrot.lane.b32.xlu0 %v1325, 104
          %v1585 = vpop.permute.xlu0 %1584
          %v1587 = vsel %vm1116, %v1583, 0
          %v1590 = vsel %vm1195, %v1585, 0
          %1592 = vmatpush.bf16.msra.mxu0 0
          %1593 = vmatpush.bf16.msra.mxu0 0
          %1594 = vmatpush.bf16.msra.mxu0 0
          %1595 = vmatpush.bf16.msra.mxu0 0
          %1596 = vmatpush.bf16.msra.mxu0 0
          %1597 = vmatpush.bf16.msra.mxu0 0
          %1598 = vmatpush.bf16.msra.mxu0 0
          %1599 = vmatpush.bf16.msra.mxu0 %v1590
          %1600 = vmatmul.bf16.gmra.mxu0 %v1587
          %v1601 = vpop.f32.mrf.mxu0
          %v1602 = vadd.f32 0.0, %v1601
          %v1603 = vpop.f32.mrf.mxu0
          %v1604 = vadd.f32 0.0, %v1603
          %1605 = vdwg.mxu0
          %v1606 = vld [vmem:[#allocation2] sm:$0xff]
          %v1607 = vld [vmem:[#allocation2 + $0x8] sm:$0xff]
          %v1608 = vpack.c.bf16 %v1604, %v1602
          %v1609 = vld [vmem:[#allocation10 + $0xc] sm:$0xf]
          %v1611 = vsel %vm1116, %v1608, 0
          %v1614 = vsel %vm1195, %v1609, 0
          %1616 = vmatpush.bf16.msra.mxu0 0
          %1617 = vmatpush.bf16.msra.mxu0 0
          %1618 = vmatpush.bf16.msra.mxu0 0
          %1619 = vmatpush.bf16.msra.mxu0 0
          %1620 = vmatpush.bf16.msra.mxu0 0
          %1621 = vmatpush.bf16.msra.mxu0 0
          %1622 = vmatpush.bf16.msra.mxu0 0
          %1623 = vmatpush.bf16.msra.mxu0 %v1614
          %1624 = vmatmul.bf16.gmra.mxu0 %v1611
          %v1625 = vpop.f32.mrf.mxu0
          %v1626 = vadd.f32 0.0, %v1625
          %v1627 = vpop.f32.mrf.mxu0
          %v1628 = vadd.f32 0.0, %v1627
          %1629 = vdwg.mxu0
          %v1630 = vadd.f32 %v1606, %v1626
          %v1631 = vadd.f32 %v1607, %v1628
          %1632 = vst.msk [vmem:[#allocation2] sm:$0xff] %vm895, %v1630
          %1633 = vst.msk [vmem:[#allocation2 + $0x8] sm:$0xff] %vm895, %v1631
          %v1634 = vld [vmem:[#allocation2] sm:$0xff]
          %v1635 = vld [vmem:[#allocation2 + $0x8] sm:$0xff]
          %v1636 = vld [vmem:[#allocation19] sm:$0x1]
          %v1637 = vld [vmem:[#allocation20] sm:$0x1]
          %v1638 = vsel %vm895, %v1634, 0.0
          %1639 = vadd.xlane.f32.xlu0 %v1638
          %v1640 = vpop.xlane.xlu0 %1639
          %v1641 = vsel %vm895, %v1635, 0.0
          %1642 = vadd.xlane.f32.xlu0 %v1641
          %v1643 = vpop.xlane.xlu0 %1642
          %v1644 = vmul.f32 %v1640, %v908
          %v1645 = vmul.f32 %v1643, %v908
          %v1646 = vsub.f32 %v1634, %v1644
          %v1647 = vsub.f32 %v1635, %v1645
          %v1648 = vmul.f32 %v1646, %v1646
          %v1649 = vmul.f32 %v1647, %v1647
          %v1650 = vsel %vm895, %v1648, 0.0
          %1651 = vadd.xlane.f32.xlu0 %v1650
          %v1652 = vpop.xlane.xlu0 %1651
          %v1653 = vsel %vm895, %v1649, 0.0
          %1654 = vadd.xlane.f32.xlu0 %v1653
          %v1655 = vpop.xlane.xlu0 %1654
          %v1656 = vmul.f32 %v1652, %v908
          %v1657 = vmul.f32 %v1655, %v908
          %v1658 = vadd.f32 %v1656, 1e-05
          %v1659 = vadd.f32 %v1657, 1e-05
          %v1660 = vrsqrt.pop %v1658
          %v1661 = vmul.f32 %v1660, %v1658
          %v1662 = vmul.f32 %v1661, %v1660
          %v1663 = vmul.f32 0.5, %v1662
          %v1664 = vsub.f32 1.5, %v1663
          %v1665 = vmul.f32 %v1660, %v1664
          %vm1666 = vweird.f32 %v1658
          %vm1667 = vweird.f32 %v1660
          %vm1668 = vmor %vm1666, %vm1667
          %v1669 = vsel %vm1668, %v1660, %v1665
          %v1670 = vrsqrt.pop %v1659
          %v1671 = vmul.f32 %v1670, %v1659
          %v1672 = vmul.f32 %v1671, %v1670
          %v1673 = vmul.f32 0.5, %v1672
          %v1674 = vsub.f32 1.5, %v1673
          %v1675 = vmul.f32 %v1670, %v1674
          %vm1676 = vweird.f32 %v1659
          %vm1677 = vweird.f32 %v1670
          %vm1678 = vmor %vm1676, %vm1677
          %v1679 = vsel %vm1678, %v1670, %v1675
          %v1680 = vmul.f32 %v1646, %v1669
          %v1681 = vmul.f32 %v1647, %v1679
          %v1683 = vperm.slane %v1636, 0
          %v1685 = vmul.f32 %v1680, %v1683
          %v1686 = vmul.f32 %v1681, %v1683
          %v1688 = vperm.slane %v1637, 0
          %v1690 = vadd.f32 %v1685, %v1688
          %v1691 = vadd.f32 %v1686, %v1688
          %v1692 = vpack.c.bf16 %v1690, %v1690
          %v1693 = vpack.c.bf16 %v1691, %v1691
          %vm1694 = vcmask 257024
          %1695 = vst.msk [vmem:[#allocation3] sm:$0xf] %vm1694, %v1692
          %1696 = vst.msk [vmem:[#allocation3 + $0x4] sm:$0xf] %vm1694, %v1693
          %1697 = vst.msk [vmem:[#allocation4] sm:$0xff] %vm895, 0.0
          %1698 = vst.msk [vmem:[#allocation4 + $0x8] sm:$0xff] %vm895, 0.0
        $region156: #{cross_attention_layer.1} parent=99 // pred_fallthru
          _
        %v1699 = vld [vmem:[#allocation3] sm:$0xf]
        %v1700 = vld [vmem:[#allocation3 + $0x4] sm:$0xf]
        %v1701 = vld [vmem:[#allocation22] sm:$0xf]
        %v1702 = vld [vmem:[#allocation22 + $0x4] sm:$0xf]
        %v1703 = vld [vmem:[#allocation22 + $0x8] sm:$0xf]
        %v1704 = vld [vmem:[#allocation22 + $0xc] sm:$0xf]
        %v1705 = vld [vmem:[#allocation23] sm:$0x1]
        %v1707 = vperm.slane %v1705, 0
        %v1711 = vunpack.c.l.b16 %v1699
        %v1712 = vunpack.c.l.b16 %v1700
        %v1713 = vpack.c.b16 %v1712, %v1711
        %v1718 = vunpack.c.l.b16 %v1701
        %v1719 = vunpack.c.l.b16 %v1702
        %v1720 = vunpack.c.l.b16 %v1703
        %v1721 = vunpack.c.l.b16 %v1704
        %v1722 = vpack.c.b16 %v1719, %v1718
        %v1723 = vpack.c.b16 %v1721, %v1720
        %vm1726 = vcmask 261120
        %v1728 = vsel %vm1726, %v1713, 0
        %1730 = vmatpush.bf16.msra.mxu0 0
        %1731 = vmatpush.bf16.msra.mxu0 0
        %1732 = vmatpush.bf16.msra.mxu0 0
        %1733 = vmatpush.bf16.msra.mxu0 0
        %1734 = vmatpush.bf16.msra.mxu0 0
        %1735 = vmatpush.bf16.msra.mxu0 0
        %1736 = vmatpush.bf16.msra.mxu0 %v1723
        %1737 = vmatpush.bf16.msra.mxu0 %v1722
        %1738 = vmatmul.bf16.gmra.mxu0 %v1728
        %v1739 = vpop.f32.mrf.mxu0
        %v1740 = vadd.f32 %v1707, %v1739
        %v1741 = vpop.f32.mrf.mxu0
        %v1742 = vadd.f32 %v1707, %v1741
        %1743 = vdwg.mxu0
        %v1744 = vmul.f32 %v1740, 0.5
        %v1745 = vmul.f32 %v1742, 0.5
        %v1746 = vmul.f32 %v1740, 0.70710677
        %v1747 = vmul.f32 %v1742, 0.70710677
        %vm1748 = vcmp.ge.f32.partialorder %v1746, 0.0
        %vm1749 = vcmp.ge.f32.partialorder %v1747, 0.0
        %v1750 = vsel %vm1748, 1.0, -1.0
        %v1751 = vsel %vm1749, 1.0, -1.0
        %v1752 = vand.u32 2147483647, %v1746
        %v1753 = vand.u32 2147483647, %v1747
        %v1754 = vmul.f32 %v1752, 0.3275911
        %v1755 = vmul.f32 %v1753, 0.3275911
        %v1756 = vadd.f32 %v1754, 1.0
        %v1757 = vadd.f32 %v1755, 1.0
        %v1758 = vrcp.pop %v1756
        %v1759 = vmul.f32 %v1756, %v1758
        %v1760 = vsub.f32 1.0, %v1759
        %v1761 = vmul.f32 %v1758, %v1760
        %v1762 = vadd.f32 %v1758, %v1761
        %vm1763 = vweird.f32 %v1756
        %vm1764 = vweird.f32 %v1758
        %vm1765 = vmor %vm1763, %vm1764
        %v1766 = vsel %vm1765, %v1758, %v1762
        %v1767 = vand.u32 2147483647, %v1756
        %vm1768 = vcmp.eq.f32.partialorder %v1767, 8.507059e+37
        %v1769 = vand.u32 %v1756, 2147483648
        %v1770 = vor.u32 1.1754944e-38, %v1769
        %v1771 = vsel %vm1768, %v1770, %v1766
        %v1772 = vmul.f32 1.0, %v1771
        %v1773 = vrcp.pop %v1757
        %v1774 = vmul.f32 %v1757, %v1773
        %v1775 = vsub.f32 1.0, %v1774
        %v1776 = vmul.f32 %v1773, %v1775
        %v1777 = vadd.f32 %v1773, %v1776
        %vm1778 = vweird.f32 %v1757
        %vm1779 = vweird.f32 %v1773
        %vm1780 = vmor %vm1778, %vm1779
        %v1781 = vsel %vm1780, %v1773, %v1777
        %v1782 = vand.u32 2147483647, %v1757
        %vm1783 = vcmp.eq.f32.partialorder %v1782, 8.507059e+37
        %v1784 = vand.u32 %v1757, 2147483648
        %v1785 = vor.u32 1.1754944e-38, %v1784
        %v1786 = vsel %vm1783, %v1785, %v1781
        %v1787 = vmul.f32 1.0, %v1786
        %v1788 = vmul.f32 %v1772, 1.0614054
        %v1789 = vmul.f32 %v1787, 1.0614054
        %v1790 = vadd.f32 %v1788, -1.4531521
        %v1791 = vadd.f32 %v1789, -1.4531521
        %v1792 = vmul.f32 %v1790, %v1772
        %v1793 = vmul.f32 %v1791, %v1787
        %v1794 = vadd.f32 %v1792, 1.4214138
        %v1795 = vadd.f32 %v1793, 1.4214138
        %v1796 = vmul.f32 %v1794, %v1772
        %v1797 = vmul.f32 %v1795, %v1787
        %v1798 = vadd.f32 %v1796, -0.28449672
        %v1799 = vadd.f32 %v1797, -0.28449672
        %v1800 = vmul.f32 %v1798, %v1772
        %v1801 = vmul.f32 %v1799, %v1787
        %v1802 = vadd.f32 %v1800, 0.2548296
        %v1803 = vadd.f32 %v1801, 0.2548296
        %v1804 = vmul.f32 %v1802, %v1772
        %v1805 = vmul.f32 %v1803, %v1787
        %v1806 = vsub.f32 0.0, %v1752
        %v1807 = vsub.f32 0.0, %v1753
        %v1808 = vmul.f32 %v1806, %v1752
        %v1809 = vmul.f32 %v1807, %v1753
        %v1810 = vmul.f32 %v1808, 1.442695
        %v1811 = vpow.pop %v1810
        %v1812 = vmul.f32 %v1809, 1.442695
        %v1813 = vpow.pop %v1812
        %v1814 = vmul.f32 %v1804, %v1811
        %v1815 = vmul.f32 %v1805, %v1813
        %v1816 = vsub.f32 1.0, %v1814
        %v1817 = vsub.f32 1.0, %v1815
        %v1818 = vmul.f32 %v1750, %v1816
        %v1819 = vmul.f32 %v1751, %v1817
        %v1820 = vadd.f32 %v1818, 1.0
        %v1821 = vadd.f32 %v1819, 1.0
        %v1822 = vmul.f32 %v1744, %v1820
        %v1823 = vmul.f32 %v1745, %v1821
        %v1824 = vld [vmem:[#allocation4] sm:$0xff]
        %v1825 = vld [vmem:[#allocation4 + $0x8] sm:$0xff]
        %v1826 = vpack.c.bf16 %v1823, %v1822
        %v1827 = vld [vmem:[%s883] sm:$0xf]
        %v1828 = vld [vmem:[%s883 + $0x4] sm:$0xf]
        %v1829 = vld [vmem:[%s883 + $0x8] sm:$0xf]
        %v1830 = vld [vmem:[%s883 + $0xc] sm:$0xf]
        %v1831 = vld [vmem:[%s883 + $0x10] sm:$0xf]
        %v1832 = vld [vmem:[%s883 + $0x14] sm:$0xf]
        %v1833 = vld [vmem:[%s883 + $0x18] sm:$0xf]
        %v1834 = vld [vmem:[%s883 + $0x1c] sm:$0xf]
        %v1835 = vld [vmem:[%s883 + $0x20] sm:$0xf]
        %v1836 = vld [vmem:[%s883 + $0x24] sm:$0xf]
        %v1837 = vld [vmem:[%s883 + $0x28] sm:$0xf]
        %v1838 = vld [vmem:[%s883 + $0x2c] sm:$0xf]
        %v1839 = vld [vmem:[%s883 + $0x30] sm:$0xf]
        %v1840 = vld [vmem:[%s883 + $0x34] sm:$0xf]
        %v1841 = vld [vmem:[%s883 + $0x38] sm:$0xf]
        %v1842 = vld [vmem:[%s883 + $0x3c] sm:$0xf]
        %v1859 = vunpack.c.l.b16 %v1827
        %v1860 = vunpack.c.l.b16 %v1828
        %v1861 = vunpack.c.l.b16 %v1829
        %v1862 = vunpack.c.l.b16 %v1830
        %v1863 = vunpack.c.l.b16 %v1831
        %v1864 = vunpack.c.l.b16 %v1832
        %v1865 = vunpack.c.l.b16 %v1833
        %v1866 = vunpack.c.l.b16 %v1834
        %v1867 = vunpack.c.l.b16 %v1835
        %v1868 = vunpack.c.l.b16 %v1836
        %v1869 = vunpack.c.l.b16 %v1837
        %v1870 = vunpack.c.l.b16 %v1838
        %v1871 = vunpack.c.l.b16 %v1839
        %v1872 = vunpack.c.l.b16 %v1840
        %v1873 = vunpack.c.l.b16 %v1841
        %v1874 = vunpack.c.l.b16 %v1842
        %v1875 = vpack.c.b16 %v1860, %v1859
        %v1876 = vpack.c.b16 %v1862, %v1861
        %v1877 = vpack.c.b16 %v1864, %v1863
        %v1878 = vpack.c.b16 %v1866, %v1865
        %v1879 = vpack.c.b16 %v1868, %v1867
        %v1880 = vpack.c.b16 %v1870, %v1869
        %v1881 = vpack.c.b16 %v1872, %v1871
        %v1882 = vpack.c.b16 %v1874, %v1873
        %1891 = vmatpush.bf16.msra.mxu0 %v1882
        %1892 = vmatpush.bf16.msra.mxu0 %v1881
        %1893 = vmatpush.bf16.msra.mxu0 %v1880
        %1894 = vmatpush.bf16.msra.mxu0 %v1879
        %1895 = vmatpush.bf16.msra.mxu0 %v1878
        %1896 = vmatpush.bf16.msra.mxu0 %v1877
        %1897 = vmatpush.bf16.msra.mxu0 %v1876
        %1898 = vmatpush.bf16.msra.mxu0 %v1875
        %1899 = vmatmul.bf16.gmra.mxu0 %v1826
        %v1900 = vpop.f32.mrf.mxu0
        %v1901 = vadd.f32 0.0, %v1900
        %v1902 = vpop.f32.mrf.mxu0
        %v1903 = vadd.f32 0.0, %v1902
        %1904 = vdwg.mxu0
        %v1905 = vadd.f32 %v1824, %v1901
        %v1906 = vadd.f32 %v1825, %v1903
        %1907 = vst.msk [vmem:[#allocation4] sm:$0xff] %vm1726, %v1905
        %1908 = vst.msk [vmem:[#allocation4 + $0x8] sm:$0xff] %vm1726, %v1906
        // Predicated region
        $region157: #{cross_attention_layer.1} parent=99 // pred_check
          %p1909 = pneg %p886
        $region158: #{cross_attention_layer.1} parent=99 // pred_check_branch
          %1911 = sbr.rel (%p1909) target = $region160
        $region159: #{cross_attention_layer.1} parent=99 // pred_region
          %v1912 = vld [vmem:[#allocation4] sm:$0xff]
          %v1913 = vld [vmem:[#allocation4 + $0x8] sm:$0xff]
          %v1914 = vld [vmem:[#allocation25] sm:$0x1]
          %v1916 = vperm.slane %v1914, 0
          %v1918 = vadd.f32 %v1912, %v1916
          %v1919 = vadd.f32 %v1913, %v1916
          %v1920 = vld [vmem:[#allocation2] sm:$0xff]
          %v1921 = vld [vmem:[#allocation2 + $0x8] sm:$0xff]
          %v1922 = vadd.f32 %v1918, %v1920
          %v1923 = vadd.f32 %v1919, %v1921
          %1924 = vst.msk [vmem:[%s869] sm:$0xff] %vm1726, %v1922
          %1925 = vst.msk [vmem:[%s869 + $0x8] sm:$0xff] %vm1726, %v1923
        $region160: #{cross_attention_layer.1} parent=99 // pred_fallthru
          _
        %s1926 = sand.u32 %s506, 1
        %s1927 = scalar_lea.sflag [#allocation7], %s1926
        %s1928 = sand.u32 %s506, 1
        %s1929 = smul.addr %s1928, 16
        %s1930 = scalar_lea.vmem [#allocation26], %s1929
        // Predicated region
        $region161: #{cross_attention_layer.1} parent=99 // pred_check
          %p1931 = pneg %p516
        $region162: #{cross_attention_layer.1} parent=99 // pred_check_branch
          %1933 = sbr.rel (%p1931) target = $region164
        $region163: #{cross_attention_layer.1} parent=99 // pred_region
          %1935 = vsyncadd %s1927, 0
          %s1936 = smul.addr %s45, 2
          %s1937 = smul.addr %s1936, 8
          %s1938 = scalar_lea.hbm %s20, %s1937
          %s1939 = sshll.u32 %s1930, 4
          %s1940 = int_to_ptr.vmem [resolvable:$true] %s1939
          %s1941 = sshll.u32 %s1938, 4
          %s1942 = int_to_ptr.hbm [resolvable:$true] %s1941
          %1947 = dma.vmem_to_hbm [thread:$0]  %s1940, 256, %s1942, %s1927, 128, 128, 8
        $region164: #{cross_attention_layer.1} parent=99 // pred_fallthru
          _
      $region100: #{cross_attention_layer.1} parent=5 // pred_fallthru
        _
      %p1948 = scmp.le.s32.totalorder 2, %s36
      // Predicated region
      $region165: #{cross_attention_layer.1} parent=5 // pred_check
        %p1949 = pneg %p1948
      $region166: #{cross_attention_layer.1} parent=5 // pred_check_branch
        %1951 = sbr.rel (%p1949) target = $region168
      $region167: #{cross_attention_layer.1} parent=5 // pred_region
        %s1952 = ssub.s32 %s36, 2
        // Predicated region
        $region169: #{cross_attention_layer.1} parent=167 // pred_check
          %p1953 = pneg %p522
        $region170: #{cross_attention_layer.1} parent=167 // pred_check_branch
          %1955 = sbr.rel (%p1953) target = $region172
        $region171: #{cross_attention_layer.1} parent=167 // pred_region
          %s1956 = sand.u32 %s507, 1
          %s1957 = scalar_lea.sflag [#allocation7], %s1956
          %s1958 = sand.u32 %s507, 1
          %s1959 = smul.addr %s1958, 16
          %s1960 = scalar_lea.vmem [#allocation26], %s1959
          %1962 = dma.done %s1957, 256
        $region172: #{cross_attention_layer.1} parent=167 // pred_fallthru
          _
      $region168: #{cross_attention_layer.1} parent=5 // pred_fallthru
        _
    $region6: #{cross_attention_layer.1} parent=1 // loop_footer
      %s40 = sadd.s32 1, %s36
    $region7: #{cross_attention_layer.1} parent=1 // loop_footer_branch
      %35 = sbr.rel target = $region3
    $region8: #{cross_attention_layer.1} parent=1 // loop_exit
      _
    %1963 = vsyncpa [#allocation6], 1
    %s1964 = scalar_lea.sflag [#allocation6], 1
    %1965 = vsyncpa %s1964, 1
    %1966 = vsyncpa [#allocation9], 1
    %1967 = vsyncpa [#allocation12], 1
    %1968 = vsyncpa [#allocation15], 1
    %1969 = vsyncpa [#allocation18], 1
    %1970 = vsyncpa [#allocation21], 1
    %1971 = vsyncpa [#allocation24], 1
    %1972 = vsyncpa [#allocation7], 1
    %s1973 = scalar_lea.sflag [#allocation7], 1
    %1974 = vsyncpa %s1973, 1

</llo_original>
